<compile_context>
chip_gen: v7x
topology: tpu7x:2x2x1
jax: 0.10.0
libtpu: 0.0.40
codegen_flags: <defaults>
</compile_context>

<pallas_src>
import jax
import jax.numpy as jnp
from jax.experimental import pallas as pl
from jax.experimental.pallas import tpu as pltpu


def _upsample_conv_kernel(xb_ref, xh_ref, w_ref, b_ref, oe_ref, oo_ref):
    # xb_ref: (TH,  W+2, Cp) bf16  low-res body rows  [h*TH, h*TH+TH)
    # xh_ref: (2,   W+2, Cp) bf16  halo rows          [h*TH+TH, h*TH+TH+2)
    # w_ref : (4, 4*Cp, Cp)  bf16  folded 2x2 phase weights (phase = 2*py+px)
    # b_ref : (1, 1, Cp)     f32   bias
    # oe_ref: (2*TH, W, Cp)  bf16  even output columns (x_out = 2j)
    # oo_ref: (2*TH, W, Cp)  bf16  odd  output columns (x_out = 2j+1)
    TH, Wp2, Cp = xb_ref.shape
    W = Wp2 - 2

    # (TH+2, W+2, Cp) halo'd tile; leading-dim concat = cheap tile placement.
    xt = jnp.concatenate([xb_ref[...], xh_ref[...]], axis=0)

    # Three column-shifted views, built once and reused by all 4 phases.
    # d=0 / d=2 keep the bf16 sublane-pair alignment; d=1 needs one sublane
    # repack (cheaper than the previous whole-tile f32 round trip).
    cols = (xt[:, 0:W, :], xt[:, 1:1 + W, :], xt[:, 2:2 + W, :])
    bias = b_ref[0]                                   # (1, Cp) f32

    def phase(py, px):
        # out[2i+py, 2j+px] = sum_{a,b in {0,1}} K[py,px][a,b] *
        #                     xpad[i+py+a, j+px+b]   (K folded in the wrapper)
        ca, cb = cols[px], cols[px + 1]
        patch = jnp.concatenate(
            [ca[py:py + TH], cb[py:py + TH],                   # (a=0, b=0/1)
             ca[py + 1:py + 1 + TH], cb[py + 1:py + 1 + TH]],  # (a=1, b=0/1)
            axis=-1)                                           # (TH, W, 4Cp)
        # The reshape is a free relabel when W % 8 == 0 (typical); otherwise
        # Mosaic inserts a repack.
        acc = jnp.dot(patch.reshape(TH * W, 4 * Cp), w_ref[2 * py + px],
                      preferred_element_type=jnp.float32)
        return acc.reshape(TH, W, Cp)

    def interleave_rows(p_top, p_bot):
        # output row 2i+0 <- p_top[i],  row 2i+1 <- p_bot[i]
        return jnp.stack([p_top, p_bot], axis=1).reshape(2 * TH, W, Cp)

    # Even output columns first; store them before computing the odd phases
    # to halve the peak of live f32 accumulators (smaller VMEM footprint).
    oe = interleave_rows(phase(0, 0), phase(1, 0)) + bias
    oe_ref[...] = oe.astype(oe_ref.dtype)
    oo = interleave_rows(phase(0, 1), phase(1, 1)) + bias
    oo_ref[...] = oo.astype(oo_ref.dtype)


def _phase_weights(weight, C, Cp):
    """Fold the 3x3 OIHW conv taps into 4 per-phase (4*Cp, Cp) bf16 matrices
    implementing nearest-2x-upsample + 3x3 conv as four 2x2 convs on x.
    (Taps are summed in f32 then rounded once to bf16; a reference conv on the
    upsampled image rounds each tap separately -> bf16-ULP level differences.)"""
    w_t = jnp.transpose(weight, (2, 3, 1, 0)).astype(jnp.float32)  # (3,3,Ci,Co)
    w_t = jnp.pad(w_t, ((0, 0), (0, 0), (0, Cp - C), (0, Cp - C)))
    # For output-row parity p, conv tap row dy lands in 2x2-kernel row a:
    #   p=0: dy -> a = [0, 1, 1]      p=1: dy -> a = [0, 0, 1]
    groups = (((0,), (1, 2)), ((0, 1), (2,)))
    phases = []
    for py in (0, 1):
        for px in (0, 1):
            blocks = []
            for a in (0, 1):
                for b in (0, 1):
                    taps = [w_t[dy, dx]
                            for dy in groups[py][a] for dx in groups[px][b]]
                    wsum = taps[0]
                    for t in taps[1:]:
                        wsum = wsum + t
                    blocks.append(wsum)                       # (Cp, Cp)
            phases.append(jnp.concatenate(blocks, axis=0))    # (4*Cp, Cp)
    return jnp.stack(phases, axis=0).astype(jnp.bfloat16)     # (4, 4*Cp, Cp)


def _tpu_vmem_capacity_bytes():
    try:
        cap = int(getattr(pltpu.get_tpu_info(), "vmem_capacity_bytes", 0))
        if cap > 0:
            return cap
    except Exception:
        pass
    return 64 * 1024 * 1024            # conservative default (v7x per-TC)


def _per_step_vmem_bytes(th, W, Cp):
    """Rough per-grid-step VMEM working set (double-buffered blocks + temps)."""
    per_row = (4 * (W + 2) * Cp        # bf16 input body block, x2 buffers
               + 16 * W * Cp           # 2 bf16 output planes, 2 rows, x2 buffers
               + 40 * W * Cp)          # in-kernel temporaries (tile concat,
                                       # col views, im2col patch, f32 accums)
    fixed = 2 * (4 * 4 * Cp * Cp * 2) + (4 << 20)   # weights (x2 bufs) + slack
    return fixed + per_row * th, per_row, fixed


def _pick_tile_rows(H, W, Cp, budget_bytes):
    """Largest EVEN low-res row tile whose working set fits the VMEM budget."""
    _, per_row, fixed = _per_step_vmem_bytes(1, W, Cp)
    th = (budget_bytes - fixed) // per_row
    th = int(min(max(th, 2), H + (H % 2)))
    th -= th % 2                       # halo BlockSpec needs TH even
    if th >= 8:
        th -= th % 8                   # clean sublane tiling
    return max(2, th)


def _upsample_conv_xla(x_nchw, weight, bias):
    """Plain XLA fallback (exact module semantics) for small channel counts."""
    up = jnp.repeat(jnp.repeat(x_nchw, 2, axis=2), 2, axis=3)
    y = jax.lax.conv_general_dilated(
        up, weight, window_strides=(1, 1), padding=((1, 1), (1, 1)),
        dimension_numbers=("NCHW", "OIHW", "NCHW"))
    return y + bias[None, :, None, None]


def upsample_forward(x_nchw, weight=None, bias=None, *, with_conv=True,
                     tile_rows=None, vmem_budget_bytes=None, use_pallas=None):
    """Forward pass matching torch `Upsample(in_channels, with_conv)`.

    x_nchw : (N, C, H, W)
    weight : (C, C, 3, 3)  (OIHW, like nn.Conv2d.weight)
    bias   : (C,)
    """
    N, C, H, W = x_nchw.shape

    if not with_conv:
        # Pure nearest upsample: memory glue only, no compute -> plain JAX.
        return jnp.repeat(jnp.repeat(x_nchw, 2, axis=2), 2, axis=3)

    assert weight.shape == (C, C, 3, 3) and bias.shape == (C,)

    if use_pallas is None:
        # Lane padding to Cp=128 makes the kernel pure padding traffic for
        # small C; gate on C >= 128 (perf review) unless explicitly forced.
        use_pallas = C >= 128
    if not use_pallas:
        return _upsample_conv_xla(x_nchw, weight, bias)

    Cp = ((C + 127) // 128) * 128                      # lane-dense channels

    cap = _tpu_vmem_capacity_bytes()
    if vmem_budget_bytes is None:
        vmem_budget_bytes = cap * 7 // 10              # ~44MiB v7x, ~90MiB v5e/v6e

    if tile_rows is None:
        TH = _pick_tile_rows(H, W, Cp, vmem_budget_bytes)
        # Megacore balance: keep at least two grid steps so both TensorCores
        # (v7x) / both megacore halves get work from the parallel grid.
        if N * (-(-H // TH)) < 2 and H >= 4:
            TH = -(-H // 2)
            TH += TH % 2
    else:
        TH = max(2, min(int(tile_rows), H + (H % 2)))
        TH -= TH % 2
    TH = max(2, TH)
    n_th = -(-H // TH)
    H_pad = n_th * TH

    # NCHW -> NHWC, bf16, 1-px zero halo, bottom pad to tile multiple,
    # channel pad to Cp.  This is the ONLY pre-kernel pass over x; the row
    # halo is expressed via a second BlockSpec below, not a stacked copy.
    # TODO(synk): keep the surrounding model in NHWC to drop the two layout
    # transposes, and then emit the W-parity interleave from the kernel as a
    # single lane-dense (2TH, 2W, Cp) block.
    x = jnp.transpose(x_nchw, (0, 2, 3, 1))
    xb = jnp.pad(x.astype(jnp.bfloat16),
                 ((0, 0), (1, 1 + H_pad - H), (1, 1), (0, Cp - C)))
    # xb: (N, H_pad + 2, W + 2, Cp)

    w_ph = _phase_weights(weight, C, Cp)               # (4, 4*Cp, Cp) bf16
    b_p = jnp.pad(bias.astype(jnp.float32), (0, Cp - C)).reshape(1, 1, Cp)

    ws_bytes, _, _ = _per_step_vmem_bytes(TH, W, Cp)
    vmem_limit = int(min(cap * 85 // 100, max(ws_bytes + (8 << 20), 32 << 20)))

    plane = jax.ShapeDtypeStruct((N, 2 * H_pad, W, Cp), jnp.bfloat16)
    flops = 2 * N * H_pad * W * 4 * (4 * Cp) * Cp
    bytes_accessed = int(xb.size * 2 + w_ph.size * 2 + b_p.size * 4
                         + 2 * N * 2 * H_pad * W * Cp * 2)

    halo_blk = TH // 2    # halo block index stride (halo block = 2 rows)

    oe, oo = pl.pallas_call(
        _upsample_conv_kernel,
        out_shape=(plane, plane),
        grid_spec=pltpu.PrefetchScalarGridSpec(
            num_scalar_prefetch=0,
            grid=(N, n_th),
            in_specs=[
                # body rows [h*TH, h*TH + TH)
                pl.BlockSpec((None, TH, W + 2, Cp),
                             lambda n, h: (n, h, 0, 0)),
                # 2 halo rows [h*TH + TH, h*TH + TH + 2) of the SAME array
                pl.BlockSpec((None, 2, W + 2, Cp),
                             lambda n, h: (n, (h + 1) * halo_blk, 0, 0)),
                # TODO(synk): weight/bias index maps are constant; single-
                # buffer them (pipeline_mode=pl.Buffered(1)) when Cp >= 512
                # makes the redundant second buffer load-bearing on v7x.
                pl.BlockSpec((4, 4 * Cp, Cp), lambda n, h: (0, 0, 0)),
                pl.BlockSpec((1, 1, Cp), lambda n, h: (0, 0, 0)),
            ],
            out_specs=[
                pl.BlockSpec((None, 2 * TH, W, Cp), lambda n, h: (n, h, 0, 0)),
                pl.BlockSpec((None, 2 * TH, W, Cp), lambda n, h: (n, h, 0, 0)),
            ],
        ),
        compiler_params=pltpu.CompilerParams(
            dimension_semantics=("parallel", "parallel"),
            vmem_limit_bytes=vmem_limit),
        cost_estimate=pl.CostEstimate(
            flops=flops, transcendentals=0, bytes_accessed=bytes_accessed),
    )(xb, xb, w_ph, b_p)

    # Interleave even/odd output columns (bf16), crop padding, and fuse the
    # cast back to the caller dtype into the NHWC->NCHW transpose pass.
    out = jnp.stack([oe, oo], axis=3).reshape(N, 2 * H_pad, 2 * W, Cp)
    out = out[:, :2 * H, :, :C]
    return jnp.transpose(out, (0, 3, 1, 2)).astype(x_nchw.dtype)


if __name__ == "__main__":
    key = jax.random.PRNGKey(0)
    k_x, k_w, k_b = jax.random.split(key, 3)

    N, C, H, W = 2, 4, 16, 16
    x = jax.random.normal(k_x, (N, C, H, W), dtype=jnp.float32)
    # deterministic synthetic Conv2d(in=C, out=C, k=3) params
    weight = jax.random.normal(k_w, (C, C, 3, 3), dtype=jnp.float32) * 0.1
    bias = jax.random.normal(k_b, (C,), dtype=jnp.float32) * 0.1

    # Force the Pallas path even though C < 128 (exercise the kernel).
    fwd = jax.jit(lambda xx, ww, bb: upsample_forward(
        xx, ww, bb, with_conv=True, tile_rows=8, use_pallas=True))
    out = jax.block_until_ready(fwd(x, weight, bias))
    assert out.shape == (N, C, 2 * H, 2 * W), out.shape

    # Reference: same bf16-rounded operands, f32 conv on the upsampled image
    # (the kernel accumulates in f32 on the MXU, stores bf16).
    xb16 = x.astype(jnp.bfloat16).astype(jnp.float32)
    wb16 = weight.astype(jnp.bfloat16).astype(jnp.float32)
    ref = _upsample_conv_xla(xb16, wb16, bias)
    err = float(jnp.max(jnp.abs(out.astype(jnp.float32) - ref)))
    assert err < 6e-2, err

    # also exercise the with_conv=False path (pure nearest upsample)
    up_plain = jnp.repeat(jnp.repeat(x, 2, axis=2), 2, axis=3)
    out_nc = jax.block_until_ready(upsample_forward(x, with_conv=False))
    assert jnp.array_equal(out_nc, up_plain)

    print("KERNEL_OK")
</pallas_src>

<mosaic_0001>
module attributes {stable_mosaic.version = 11 : i64} {
  func.func @_upsample_conv_kernel(%arg0: i32, %arg1: i32, %arg2: memref<1x8x18x128xbf16, #tpu.memory_space<vmem>>, %arg3: memref<1x2x18x128xbf16, #tpu.memory_space<vmem>>, %arg4: memref<4x512x128xbf16, #tpu.memory_space<vmem>>, %arg5: memref<1x1x128xf32, #tpu.memory_space<vmem>>, %arg6: memref<1x16x16x128xbf16, #tpu.memory_space<vmem>>, %arg7: memref<1x16x16x128xbf16, #tpu.memory_space<vmem>>) attributes {dimension_semantics = [#tpu.dimension_semantics<parallel>, #tpu.dimension_semantics<parallel>], iteration_bounds = array<i64: 2, 2>, scalar_prefetch = 0 : i64, scratch_operands = 0 : i64, tpu.core_type = #tpu.core_type<tc>, window_params = [{transform_indices = @transform_0, window_bounds = array<i64: 1, 8, 18, 128>}, {transform_indices = @transform_1, window_bounds = array<i64: 1, 2, 18, 128>}, {pipeline_mode = #tpu.pipeline_mode<synchronous>, transform_indices = @transform_2, window_bounds = array<i64: 4, 512, 128>}, {pipeline_mode = #tpu.pipeline_mode<synchronous>, transform_indices = @transform_3, window_bounds = array<i64: 1, 1, 128>}, {transform_indices = @transform_4, window_bounds = array<i64: 1, 16, 16, 128>}, {transform_indices = @transform_5, window_bounds = array<i64: 1, 16, 16, 128>}]} {
    %c0 = arith.constant 0 : index
    %c0_0 = arith.constant 0 : index
    %c0_1 = arith.constant 0 : index
    %c0_2 = arith.constant 0 : index
    %0 = vector.load %arg2[%c0, %c0_0, %c0_1, %c0_2] : memref<1x8x18x128xbf16, #tpu.memory_space<vmem>>, vector<1x8x18x128xbf16>
    %1 = vector.shape_cast %0 : vector<1x8x18x128xbf16> to vector<8x18x128xbf16>
    %c0_3 = arith.constant 0 : index
    %c0_4 = arith.constant 0 : index
    %c0_5 = arith.constant 0 : index
    %c0_6 = arith.constant 0 : index
    %2 = vector.load %arg3[%c0_3, %c0_4, %c0_5, %c0_6] : memref<1x2x18x128xbf16, #tpu.memory_space<vmem>>, vector<1x2x18x128xbf16>
    %3 = vector.shape_cast %2 : vector<1x2x18x128xbf16> to vector<2x18x128xbf16>
    %4 = tpu.concatenate %1, %3 in 0 : vector<8x18x128xbf16>, vector<2x18x128xbf16> -> vector<10x18x128xbf16>
    %5 = vector.extract_strided_slice %4 {offsets = [0, 0, 0], sizes = [10, 16, 128], strides = [1, 1, 1]} : vector<10x18x128xbf16> to vector<10x16x128xbf16>
    %6 = vector.extract_strided_slice %4 {offsets = [0, 1, 0], sizes = [10, 16, 128], strides = [1, 1, 1]} : vector<10x18x128xbf16> to vector<10x16x128xbf16>
    %7 = vector.extract_strided_slice %4 {offsets = [0, 2, 0], sizes = [10, 16, 128], strides = [1, 1, 1]} : vector<10x18x128xbf16> to vector<10x16x128xbf16>
    %c0_7 = arith.constant 0 : index
    %c0_8 = arith.constant 0 : index
    %c0_9 = arith.constant 0 : index
    %8 = vector.load %arg5[%c0_7, %c0_8, %c0_9] : memref<1x1x128xf32, #tpu.memory_space<vmem>>, vector<1x1x128xf32>
    %9 = vector.shape_cast %8 : vector<1x1x128xf32> to vector<1x128xf32>
    %10 = vector.extract_strided_slice %5 {offsets = [0, 0, 0], sizes = [8, 16, 128], strides = [1, 1, 1]} : vector<10x16x128xbf16> to vector<8x16x128xbf16>
    %11 = vector.extract_strided_slice %6 {offsets = [0, 0, 0], sizes = [8, 16, 128], strides = [1, 1, 1]} : vector<10x16x128xbf16> to vector<8x16x128xbf16>
    %12 = vector.extract_strided_slice %5 {offsets = [1, 0, 0], sizes = [8, 16, 128], strides = [1, 1, 1]} : vector<10x16x128xbf16> to vector<8x16x128xbf16>
    %13 = vector.extract_strided_slice %6 {offsets = [1, 0, 0], sizes = [8, 16, 128], strides = [1, 1, 1]} : vector<10x16x128xbf16> to vector<8x16x128xbf16>
    %14 = tpu.concatenate %10, %11, %12, %13 in 2 : vector<8x16x128xbf16>, vector<8x16x128xbf16>, vector<8x16x128xbf16>, vector<8x16x128xbf16> -> vector<8x16x512xbf16>
    %15 = vector.shape_cast %14 : vector<8x16x512xbf16> to vector<128x512xbf16>
    %c0_10 = arith.constant 0 : index
    %c0_11 = arith.constant 0 : index
    %c0_12 = arith.constant 0 : index
    %16 = vector.load %arg4[%c0_10, %c0_11, %c0_12] : memref<4x512x128xbf16, #tpu.memory_space<vmem>>, vector<1x512x128xbf16>
    %17 = vector.shape_cast %16 : vector<1x512x128xbf16> to vector<512x128xbf16>
    %cst = arith.constant dense<0.000000e+00> : vector<128x128xf32>
    %18 = tpu.matmul %15, %17, %cst {dimension_numbers = #tpu.dot_dimension_numbers<[1], [0], [0], [1], [0, 0, 1, 1], [], []>} : vector<128x512xbf16>, vector<512x128xbf16>, vector<128x128xf32> -> vector<128x128xf32>
    %19 = vector.shape_cast %18 : vector<128x128xf32> to vector<8x16x128xf32>
    %20 = vector.extract_strided_slice %5 {offsets = [1, 0, 0], sizes = [8, 16, 128], strides = [1, 1, 1]} : vector<10x16x128xbf16> to vector<8x16x128xbf16>
    %21 = vector.extract_strided_slice %6 {offsets = [1, 0, 0], sizes = [8, 16, 128], strides = [1, 1, 1]} : vector<10x16x128xbf16> to vector<8x16x128xbf16>
    %22 = vector.extract_strided_slice %5 {offsets = [2, 0, 0], sizes = [8, 16, 128], strides = [1, 1, 1]} : vector<10x16x128xbf16> to vector<8x16x128xbf16>
    %23 = vector.extract_strided_slice %6 {offsets = [2, 0, 0], sizes = [8, 16, 128], strides = [1, 1, 1]} : vector<10x16x128xbf16> to vector<8x16x128xbf16>
    %24 = tpu.concatenate %20, %21, %22, %23 in 2 : vector<8x16x128xbf16>, vector<8x16x128xbf16>, vector<8x16x128xbf16>, vector<8x16x128xbf16> -> vector<8x16x512xbf16>
    %25 = vector.shape_cast %24 : vector<8x16x512xbf16> to vector<128x512xbf16>
    %c2 = arith.constant 2 : index
    %c0_13 = arith.constant 0 : index
    %c0_14 = arith.constant 0 : index
    %26 = vector.load %arg4[%c2, %c0_13, %c0_14] : memref<4x512x128xbf16, #tpu.memory_space<vmem>>, vector<1x512x128xbf16>
    %27 = vector.shape_cast %26 : vector<1x512x128xbf16> to vector<512x128xbf16>
    %cst_15 = arith.constant dense<0.000000e+00> : vector<128x128xf32>
    %28 = tpu.matmul %25, %27, %cst_15 {dimension_numbers = #tpu.dot_dimension_numbers<[1], [0], [0], [1], [0, 0, 1, 1], [], []>} : vector<128x512xbf16>, vector<512x128xbf16>, vector<128x128xf32> -> vector<128x128xf32>
    %29 = vector.shape_cast %28 : vector<128x128xf32> to vector<8x16x128xf32>
    %30 = vector.shape_cast %19 : vector<8x16x128xf32> to vector<8x1x16x128xf32>
    %31 = vector.shape_cast %29 : vector<8x16x128xf32> to vector<8x1x16x128xf32>
    %32 = tpu.concatenate %30, %31 in 1 : vector<8x1x16x128xf32>, vector<8x1x16x128xf32> -> vector<8x2x16x128xf32>
    %33 = vector.shape_cast %32 : vector<8x2x16x128xf32> to vector<16x16x128xf32>
    %34 = vector.shape_cast %9 : vector<1x128xf32> to vector<1x1x128xf32>
    %35 = vector.broadcast %34 : vector<1x1x128xf32> to vector<16x16x128xf32>
    %36 = arith.addf %33, %35 : vector<16x16x128xf32>
    %37 = arith.truncf %36 : vector<16x16x128xf32> to vector<16x16x128xbf16>
    %c0_16 = arith.constant 0 : index
    %c0_17 = arith.constant 0 : index
    %c0_18 = arith.constant 0 : index
    %c0_19 = arith.constant 0 : index
    %38 = vector.load %arg6[%c0_16, %c0_17, %c0_18, %c0_19] : memref<1x16x16x128xbf16, #tpu.memory_space<vmem>>, vector<1x16x16x128xbf16>
    %39 = vector.shape_cast %38 : vector<1x16x16x128xbf16> to vector<16x16x128xbf16>
    %40 = vector.shape_cast %37 : vector<16x16x128xbf16> to vector<1x16x16x128xbf16>
    tpu.vector_store %arg6[%c0_16, %c0_17, %c0_18, %c0_19], %40 {strides = array<i32>} : memref<1x16x16x128xbf16, #tpu.memory_space<vmem>>, vector<1x16x16x128xbf16>,
    %41 = vector.extract_strided_slice %6 {offsets = [0, 0, 0], sizes = [8, 16, 128], strides = [1, 1, 1]} : vector<10x16x128xbf16> to vector<8x16x128xbf16>
    %42 = vector.extract_strided_slice %7 {offsets = [0, 0, 0], sizes = [8, 16, 128], strides = [1, 1, 1]} : vector<10x16x128xbf16> to vector<8x16x128xbf16>
    %43 = vector.extract_strided_slice %6 {offsets = [1, 0, 0], sizes = [8, 16, 128], strides = [1, 1, 1]} : vector<10x16x128xbf16> to vector<8x16x128xbf16>
    %44 = vector.extract_strided_slice %7 {offsets = [1, 0, 0], sizes = [8, 16, 128], strides = [1, 1, 1]} : vector<10x16x128xbf16> to vector<8x16x128xbf16>
    %45 = tpu.concatenate %41, %42, %43, %44 in 2 : vector<8x16x128xbf16>, vector<8x16x128xbf16>, vector<8x16x128xbf16>, vector<8x16x128xbf16> -> vector<8x16x512xbf16>
    %46 = vector.shape_cast %45 : vector<8x16x512xbf16> to vector<128x512xbf16>
    %c1 = arith.constant 1 : index
    %c0_20 = arith.constant 0 : index
    %c0_21 = arith.constant 0 : index
    %47 = vector.load %arg4[%c1, %c0_20, %c0_21] : memref<4x512x128xbf16, #tpu.memory_space<vmem>>, vector<1x512x128xbf16>
    %48 = vector.shape_cast %47 : vector<1x512x128xbf16> to vector<512x128xbf16>
    %cst_22 = arith.constant dense<0.000000e+00> : vector<128x128xf32>
    %49 = tpu.matmul %46, %48, %cst_22 {dimension_numbers = #tpu.dot_dimension_numbers<[1], [0], [0], [1], [0, 0, 1, 1], [], []>} : vector<128x512xbf16>, vector<512x128xbf16>, vector<128x128xf32> -> vector<128x128xf32>
    %50 = vector.shape_cast %49 : vector<128x128xf32> to vector<8x16x128xf32>
    %51 = vector.extract_strided_slice %6 {offsets = [1, 0, 0], sizes = [8, 16, 128], strides = [1, 1, 1]} : vector<10x16x128xbf16> to vector<8x16x128xbf16>
    %52 = vector.extract_strided_slice %7 {offsets = [1, 0, 0], sizes = [8, 16, 128], strides = [1, 1, 1]} : vector<10x16x128xbf16> to vector<8x16x128xbf16>
    %53 = vector.extract_strided_slice %6 {offsets = [2, 0, 0], sizes = [8, 16, 128], strides = [1, 1, 1]} : vector<10x16x128xbf16> to vector<8x16x128xbf16>
    %54 = vector.extract_strided_slice %7 {offsets = [2, 0, 0], sizes = [8, 16, 128], strides = [1, 1, 1]} : vector<10x16x128xbf16> to vector<8x16x128xbf16>
    %55 = tpu.concatenate %51, %52, %53, %54 in 2 : vector<8x16x128xbf16>, vector<8x16x128xbf16>, vector<8x16x128xbf16>, vector<8x16x128xbf16> -> vector<8x16x512xbf16>
    %56 = vector.shape_cast %55 : vector<8x16x512xbf16> to vector<128x512xbf16>
    %c3 = arith.constant 3 : index
    %c0_23 = arith.constant 0 : index
    %c0_24 = arith.constant 0 : index
    %57 = vector.load %arg4[%c3, %c0_23, %c0_24] : memref<4x512x128xbf16, #tpu.memory_space<vmem>>, vector<1x512x128xbf16>
    %58 = vector.shape_cast %57 : vector<1x512x128xbf16> to vector<512x128xbf16>
    %cst_25 = arith.constant dense<0.000000e+00> : vector<128x128xf32>
    %59 = tpu.matmul %56, %58, %cst_25 {dimension_numbers = #tpu.dot_dimension_numbers<[1], [0], [0], [1], [0, 0, 1, 1], [], []>} : vector<128x512xbf16>, vector<512x128xbf16>, vector<128x128xf32> -> vector<128x128xf32>
    %60 = vector.shape_cast %59 : vector<128x128xf32> to vector<8x16x128xf32>
    %61 = vector.shape_cast %50 : vector<8x16x128xf32> to vector<8x1x16x128xf32>
    %62 = vector.shape_cast %60 : vector<8x16x128xf32> to vector<8x1x16x128xf32>
    %63 = tpu.concatenate %61, %62 in 1 : vector<8x1x16x128xf32>, vector<8x1x16x128xf32> -> vector<8x2x16x128xf32>
    %64 = vector.shape_cast %63 : vector<8x2x16x128xf32> to vector<16x16x128xf32>
    %65 = vector.shape_cast %9 : vector<1x128xf32> to vector<1x1x128xf32>
    %66 = vector.broadcast %65 : vector<1x1x128xf32> to vector<16x16x128xf32>
    %67 = arith.addf %64, %66 : vector<16x16x128xf32>
    %68 = arith.truncf %67 : vector<16x16x128xf32> to vector<16x16x128xbf16>
    %c0_26 = arith.constant 0 : index
    %c0_27 = arith.constant 0 : index
    %c0_28 = arith.constant 0 : index
    %c0_29 = arith.constant 0 : index
    %69 = vector.load %arg7[%c0_26, %c0_27, %c0_28, %c0_29] : memref<1x16x16x128xbf16, #tpu.memory_space<vmem>>, vector<1x16x16x128xbf16>
    %70 = vector.shape_cast %69 : vector<1x16x16x128xbf16> to vector<16x16x128xbf16>
    %71 = vector.shape_cast %68 : vector<16x16x128xbf16> to vector<1x16x16x128xbf16>
    tpu.vector_store %arg7[%c0_26, %c0_27, %c0_28, %c0_29], %71 {strides = array<i32>} : memref<1x16x16x128xbf16, #tpu.memory_space<vmem>>, vector<1x16x16x128xbf16>,
    return
  }
  func.func @transform_0(%arg0: i32, %arg1: i32) -> (i32, i32, i32, i32) {
    %c0_i32 = arith.constant 0 : i32
    %c0_i32_0 = arith.constant 0 : i32
    %c0_i32_1 = arith.constant 0 : i32
    return %arg0, %arg1, %c0_i32, %c0_i32_0 : i32, i32, i32, i32
  }
  func.func @transform_1(%arg0: i32, %arg1: i32) -> (i32, i32, i32, i32) {
    %c1_i32 = arith.constant 1 : i32
    %0 = arith.addi %arg1, %c1_i32 : i32
    %c4_i32 = arith.constant 4 : i32
    %1 = arith.muli %0, %c4_i32 : i32
    %c0_i32 = arith.constant 0 : i32
    %c0_i32_0 = arith.constant 0 : i32
    %c0_i32_1 = arith.constant 0 : i32
    return %arg0, %1, %c0_i32, %c0_i32_0 : i32, i32, i32, i32
  }
  func.func @transform_2(%arg0: i32, %arg1: i32) -> (i32, i32, i32) {
    %c0_i32 = arith.constant 0 : i32
    %c0_i32_0 = arith.constant 0 : i32
    %c0_i32_1 = arith.constant 0 : i32
    %c0_i32_2 = arith.constant 0 : i32
    return %c0_i32, %c0_i32_0, %c0_i32_1 : i32, i32, i32
  }
  func.func @transform_3(%arg0: i32, %arg1: i32) -> (i32, i32, i32) {
    %c0_i32 = arith.constant 0 : i32
    %c0_i32_0 = arith.constant 0 : i32
    %c0_i32_1 = arith.constant 0 : i32
    %c0_i32_2 = arith.constant 0 : i32
    return %c0_i32, %c0_i32_0, %c0_i32_1 : i32, i32, i32
  }
  func.func @transform_4(%arg0: i32, %arg1: i32) -> (i32, i32, i32, i32) {
    %c0_i32 = arith.constant 0 : i32
    %c0_i32_0 = arith.constant 0 : i32
    %c0_i32_1 = arith.constant 0 : i32
    return %arg0, %arg1, %c0_i32, %c0_i32_0 : i32, i32, i32, i32
  }
  func.func @transform_5(%arg0: i32, %arg1: i32) -> (i32, i32, i32, i32) {
    %c0_i32 = arith.constant 0 : i32
    %c0_i32_0 = arith.constant 0 : i32
    %c0_i32_1 = arith.constant 0 : i32
    return %arg0, %arg1, %c0_i32, %c0_i32_0 : i32, i32, i32, i32
  }
}

</mosaic_0001>

<llo_original>
// kernel: _lambda_.1
$region0: #{_lambda_.1}
  #allocation0 [shape = 'u32[]', space=smem, size = 0x4, offset = 0x4, fixed_abs, tag = 'smem constant byte address 0x4 - core index']
  #allocation1 [shape = 'u32[144,128]{1,0:T(1,128)}', space=vmem, size = 0x12000, scoped, tag = 'internal scratch']
  %s0 = inlined_call_operand.vmem [shape: bf16[2,18,18,128], index: 0, kind: input, shape index: {}, may-alias: {0,1}]
  %s1 = inlined_call_operand.vmem [shape: bf16[2,18,18,128], index: 1, kind: input, shape index: {}, may-alias: {0,1}]
  %s2 = inlined_call_operand.vmem [shape: bf16[4,512,128], index: 2, kind: input, shape index: {}]
  %s3 = inlined_call_operand.vmem [shape: f32[1,1,128], index: 3, kind: input, shape index: {}]
  %s4 = inlined_call_operand.vmem [shape: bf16[2,32,16,128], index: 4, kind: output, shape index: {0}]
  %s5 = inlined_call_operand.vmem [shape: bf16[2,32,16,128], index: 5, kind: output, shape index: {1}]
  %6 = xla_tuple %s4, %s5
  %s7 = sld [smem:[#allocation0]]
  $region57: #{_lambda_.1} parent=0
    _
  %s9 = ssub.s32 1, %s7
  %s10 = scalar_select 0, %s9, %s7
  loop: start=0, step=1, limit=6
  $region2: #{_lambda_.1} parent=0 // loop_pre_header
    _
  $region3: #{_lambda_.1} parent=0 // loop_header
    %s12 = sphi 0, %s16
    %p13 = scmp.ge.s32.totalorder %s12, 6
    %s19 = sphi 0, %s31
    %s20 = sphi 0, %s27
    %s21 = sphi 0, %s19
    %s22 = sphi 0, %s20
    %s23 = sphi 0, %s21
    %s24 = sphi 0, %s22
    %s36 = sphi 0, %s38
    %s39 = sphi 0, %s36
    %s40 = sphi 0, %s39
    %s56 = sphi 0, %s40
    %s68 = sphi 0, %s70
    %s71 = sphi 0, %s68
    %s72 = sphi 0, %s71
    %s88 = sphi 0, %s72
    %s92 = sphi 0, %s92
    %s94 = sphi 0, %s92
    %s95 = sphi 0, %s94
    %s109 = sphi 0, %s95
    %s113 = sphi 0, %s113
    %s115 = sphi 0, %s113
    %s116 = sphi 0, %s115
    %s130 = sphi 0, %s116
    %s138 = sphi 0, %s140
    %s141 = sphi 0, %s138
    %s142 = sphi 0, %s141
    %s158 = sphi 0, %s142
    %s166 = sphi 0, %s168
    %s169 = sphi 0, %s166
    %s170 = sphi 0, %s169
    %s186 = sphi 0, %s170
  $region4: #{_lambda_.1} parent=0 // loop_header_branch
    %15 = sbr.rel (%p13) target = $region8
  $region5: #{_lambda_.1} parent=0 // loop_body
    %s17 = ssub.s32 %s12, 1
    %s18 = ssub.s32 %s12, 2
    %s25 = sadd.s32 1, %s20
    %p26 = scmp.ge.s32.totalorder %s25, 2
    %s27 = scalar_select %p26, 0, %s25
    %s28 = sadd.s32 1, %s19
    %s29 = scalar_select %p26, %s28, %s19
    %p30 = scmp.ge.s32.totalorder %s29, 2
    %s31 = scalar_select %p30, 0, %s29
    %s32 = ssub.s32 %s19, %s31
    %s33 = ssub.s32 %s20, %s27
    %s34 = sor.u32 %s32, %s33
    %p35 = scmp.eq.s32.totalorder %s34, 0
    %s37 = sadd.s32 %s36, 1
    %s38 = scalar_select %p35, %s36, %s37
    %p41 = pneg %p35
    %p42 = scmp.eq.s32.totalorder %s12, 3
    %p43 = por %p41, %p42
    %p44 = scmp.ne.s32.totalorder %s36, %s39
    %p45 = scmp.eq.s32.totalorder %s12, 0
    %p46 = por %p44, %p45
    %p47 = scmp.ne.s32.totalorder %s36, %s39
    %p48 = scmp.eq.s32.totalorder %s17, 3
    %p49 = por %p47, %p48
    %p50 = scmp.ne.s32.totalorder %s39, %s40
    %p51 = scmp.eq.s32.totalorder %s17, 0
    %p52 = por %p50, %p51
    %p53 = scmp.ne.s32.totalorder %s39, %s40
    %p54 = scmp.eq.s32.totalorder %s18, 3
    %p55 = por %p53, %p54
    %p57 = scmp.ne.s32.totalorder %s40, %s56
    %p58 = scmp.eq.s32.totalorder %s18, 0
    %p59 = por %p57, %p58
    %s60 = sadd.s32 %s20, 1
    %s61 = smul.u32 %s60, 4
    %s62 = sadd.s32 %s27, 1
    %s63 = smul.u32 %s62, 4
    %s64 = ssub.s32 %s19, %s31
    %s65 = ssub.s32 %s61, %s63
    %s66 = sor.u32 %s64, %s65
    %p67 = scmp.eq.s32.totalorder %s66, 0
    %s69 = sadd.s32 %s68, 1
    %s70 = scalar_select %p67, %s68, %s69
    %p73 = pneg %p67
    %p74 = scmp.eq.s32.totalorder %s12, 3
    %p75 = por %p73, %p74
    %p76 = scmp.ne.s32.totalorder %s68, %s71
    %p77 = scmp.eq.s32.totalorder %s12, 0
    %p78 = por %p76, %p77
    %p79 = scmp.ne.s32.totalorder %s68, %s71
    %p80 = scmp.eq.s32.totalorder %s17, 3
    %p81 = por %p79, %p80
    %p82 = scmp.ne.s32.totalorder %s71, %s72
    %p83 = scmp.eq.s32.totalorder %s17, 0
    %p84 = por %p82, %p83
    %p85 = scmp.ne.s32.totalorder %s71, %s72
    %p86 = scmp.eq.s32.totalorder %s18, 3
    %p87 = por %p85, %p86
    %p89 = scmp.ne.s32.totalorder %s72, %s88
    %p90 = scmp.eq.s32.totalorder %s18, 0
    %p91 = por %p89, %p90
    %s93 = sadd.s32 %s92, 1
    %p96 = scmp.eq.s32.totalorder %s12, 3
    %p97 = scmp.ne.s32.totalorder %s92, %s94
    %p98 = scmp.eq.s32.totalorder %s12, 0
    %p99 = por %p97, %p98
    %p100 = scmp.ne.s32.totalorder %s92, %s94
    %p101 = scmp.eq.s32.totalorder %s17, 3
    %p102 = por %p100, %p101
    %p103 = scmp.ne.s32.totalorder %s94, %s95
    %p104 = scmp.eq.s32.totalorder %s17, 0
    %p105 = por %p103, %p104
    %p106 = scmp.ne.s32.totalorder %s94, %s95
    %p107 = scmp.eq.s32.totalorder %s18, 3
    %p108 = por %p106, %p107
    %p110 = scmp.ne.s32.totalorder %s95, %s109
    %p111 = scmp.eq.s32.totalorder %s18, 0
    %p112 = por %p110, %p111
    %s114 = sadd.s32 %s113, 1
    %p117 = scmp.eq.s32.totalorder %s12, 3
    %p118 = scmp.ne.s32.totalorder %s113, %s115
    %p119 = scmp.eq.s32.totalorder %s12, 0
    %p120 = por %p118, %p119
    %p121 = scmp.ne.s32.totalorder %s113, %s115
    %p122 = scmp.eq.s32.totalorder %s17, 3
    %p123 = por %p121, %p122
    %p124 = scmp.ne.s32.totalorder %s115, %s116
    %p125 = scmp.eq.s32.totalorder %s17, 0
    %p126 = por %p124, %p125
    %p127 = scmp.ne.s32.totalorder %s115, %s116
    %p128 = scmp.eq.s32.totalorder %s18, 3
    %p129 = por %p127, %p128
    %p131 = scmp.ne.s32.totalorder %s116, %s130
    %p132 = scmp.eq.s32.totalorder %s18, 0
    %p133 = por %p131, %p132
    %s134 = ssub.s32 %s19, %s31
    %s135 = ssub.s32 %s20, %s27
    %s136 = sor.u32 %s134, %s135
    %p137 = scmp.eq.s32.totalorder %s136, 0
    %s139 = sadd.s32 %s138, 1
    %s140 = scalar_select %p137, %s138, %s139
    %p143 = pneg %p137
    %p144 = scmp.eq.s32.totalorder %s12, 3
    %p145 = por %p143, %p144
    %p146 = scmp.ne.s32.totalorder %s138, %s141
    %p147 = scmp.eq.s32.totalorder %s12, 0
    %p148 = por %p146, %p147
    %p149 = scmp.ne.s32.totalorder %s138, %s141
    %p150 = scmp.eq.s32.totalorder %s17, 3
    %p151 = por %p149, %p150
    %p152 = scmp.ne.s32.totalorder %s141, %s142
    %p153 = scmp.eq.s32.totalorder %s17, 0
    %p154 = por %p152, %p153
    %p155 = scmp.ne.s32.totalorder %s141, %s142
    %p156 = scmp.eq.s32.totalorder %s18, 3
    %p157 = por %p155, %p156
    %p159 = scmp.ne.s32.totalorder %s142, %s158
    %p160 = scmp.eq.s32.totalorder %s18, 0
    %p161 = por %p159, %p160
    %s162 = ssub.s32 %s19, %s31
    %s163 = ssub.s32 %s20, %s27
    %s164 = sor.u32 %s162, %s163
    %p165 = scmp.eq.s32.totalorder %s164, 0
    %s167 = sadd.s32 %s166, 1
    %s168 = scalar_select %p165, %s166, %s167
    %p171 = pneg %p165
    %p172 = scmp.eq.s32.totalorder %s12, 3
    %p173 = por %p171, %p172
    %p174 = scmp.ne.s32.totalorder %s166, %s169
    %p175 = scmp.eq.s32.totalorder %s12, 0
    %p176 = por %p174, %p175
    %p177 = scmp.ne.s32.totalorder %s166, %s169
    %p178 = scmp.eq.s32.totalorder %s17, 3
    %p179 = por %p177, %p178
    %p180 = scmp.ne.s32.totalorder %s169, %s170
    %p181 = scmp.eq.s32.totalorder %s17, 0
    %p182 = por %p180, %p181
    %p183 = scmp.ne.s32.totalorder %s169, %s170
    %p184 = scmp.eq.s32.totalorder %s18, 3
    %p185 = por %p183, %p184
    %p187 = scmp.ne.s32.totalorder %s170, %s186
    %p188 = scmp.eq.s32.totalorder %s18, 0
    %p189 = por %p187, %p188
    %p190 = scmp.le.s32.totalorder 1, %s12
    %p191 = scmp.lt.s32.totalorder %s12, 5
    %p192 = pnand %p190, %p191
    %p193 = pneg %p192
    // Predicated region
    $region9: #{_lambda_.1} parent=5 // pred_check
      _
    $region10: #{_lambda_.1} parent=5 // pred_check_branch
      %195 = sbr.rel (%p192) target = $region12
    $region11: #{_lambda_.1} parent=5 // pred_region
      %s196 = ssub.s32 %s12, 1
      // Predicated region
      $region13: #{_lambda_.1} parent=11 // pred_check
        %p197 = pneg %p105
      $region14: #{_lambda_.1} parent=11 // pred_check_branch
        %199 = sbr.rel (%p197) target = $region16
      $region15: #{_lambda_.1} parent=11 // pred_region
        _
      $region16: #{_lambda_.1} parent=11 // pred_fallthru
        _
      // Predicated region
      $region17: #{_lambda_.1} parent=11 // pred_check
        %p200 = pneg %p126
      $region18: #{_lambda_.1} parent=11 // pred_check_branch
        %202 = sbr.rel (%p200) target = $region20
      $region19: #{_lambda_.1} parent=11 // pred_region
        _
      $region20: #{_lambda_.1} parent=11 // pred_fallthru
        _
    $region12: #{_lambda_.1} parent=5 // pred_fallthru
      _
    %p203 = scmp.lt.s32.totalorder %s12, 4
    // Predicated region
    $region21: #{_lambda_.1} parent=5 // pred_check
      %p204 = pneg %p203
    $region22: #{_lambda_.1} parent=5 // pred_check_branch
      %206 = sbr.rel (%p204) target = $region24
    $region23: #{_lambda_.1} parent=5 // pred_region
      // Predicated region
      $region25: #{_lambda_.1} parent=23 // pred_check
        %p207 = pneg %p46
      $region26: #{_lambda_.1} parent=23 // pred_check_branch
        %209 = sbr.rel (%p207) target = $region28
      $region27: #{_lambda_.1} parent=23 // pred_region
        %s210 = smul.u32 8, %s20
        %s211 = ssub.s32 18, %s210
        %p212 = scmp.lt.s32.totalorder %s211, 8
        %s213 = scalar_select %p212, %s211, 8
        %s214 = smul.u32 64, %s213
        %s215 = smul.u32 %s214, 3
        %p216 = scmp.lt.s32.totalorder %s19, 1
        %s217 = scalar_select %p216, %s19, 1
        %p218 = scmp.lt.s32.totalorder %s210, 17
        %s219 = scalar_select %p218, %s210, 17
        %s220 = smul.addr %s219, 3
        %s221 = smul.addr %s217, 54
        %s222 = sadd.s32 %s220, %s221
        %s223 = smul.addr %s222, 4
        %s224 = scalar_lea.vmem %s0, %s223
        %s225 = smul.u32 8, %s20
        %s226 = ssub.s32 18, %s225
        %p227 = scmp.lt.s32.totalorder %s226, 8
        %s228 = scalar_select %p227, %s226, 8
        %s229 = smul.u32 64, %s228
        %s230 = smul.u32 %s229, 3
      $region28: #{_lambda_.1} parent=23 // pred_fallthru
        _
      // Predicated region
      $region29: #{_lambda_.1} parent=23 // pred_check
        %p231 = pneg %p78
      $region30: #{_lambda_.1} parent=23 // pred_check_branch
        %233 = sbr.rel (%p231) target = $region32
      $region31: #{_lambda_.1} parent=23 // pred_region
        %s234 = sadd.s32 %s20, 1
        %s235 = smul.u32 %s234, 4
        %s236 = smul.u32 2, %s235
        %p237 = scmp.lt.s32.totalorder %s19, 1
        %s238 = scalar_select %p237, %s19, 1
        %p239 = scmp.lt.s32.totalorder %s236, 17
        %s240 = scalar_select %p239, %s236, 17
        %s241 = smul.addr %s240, 3
        %s242 = smul.addr %s238, 54
        %s243 = sadd.s32 %s241, %s242
        %s244 = smul.addr %s243, 4
        %s245 = scalar_lea.vmem %s1, %s244
        %s246 = sadd.s32 %s20, 1
        %s247 = smul.u32 %s246, 4
        %s248 = smul.u32 2, %s247
      $region32: #{_lambda_.1} parent=23 // pred_fallthru
        _
    $region24: #{_lambda_.1} parent=5 // pred_fallthru
      _
    %p249 = scmp.le.s32.totalorder 1, %s12
    %p250 = scmp.lt.s32.totalorder %s12, 5
    %p251 = pnand %p249, %p250
    %p252 = pneg %p251
    // Predicated region
    $region33: #{_lambda_.1} parent=5 // pred_check
      _
    $region34: #{_lambda_.1} parent=5 // pred_check_branch
      %254 = sbr.rel (%p251) target = $region36
    $region35: #{_lambda_.1} parent=5 // pred_region
      %s255 = ssub.s32 %s12, 1
      %s256 = smul.u32 8, %s22
      %s257 = ssub.s32 18, %s256
      %p258 = scmp.lt.s32.totalorder %s257, 8
      %s259 = scalar_select %p258, %s257, 8
      %s260 = smul.u32 64, %s259
      %s261 = smul.u32 %s260, 3
      %p262 = scmp.lt.s32.totalorder %s21, 1
      %s263 = scalar_select %p262, %s21, 1
      %p264 = scmp.lt.s32.totalorder %s256, 17
      %s265 = scalar_select %p264, %s256, 17
      %s266 = smul.addr %s265, 3
      %s267 = smul.addr %s263, 54
      %s268 = sadd.s32 %s266, %s267
      %s269 = smul.addr %s268, 4
      %s270 = scalar_lea.vmem %s0, %s269
      %p271 = pneg %p52
      %p272 = pneg %p49
      %s273 = sadd.s32 %s22, 1
      %s274 = smul.u32 %s273, 4
      %s275 = smul.u32 2, %s274
      %p276 = scmp.lt.s32.totalorder %s21, 1
      %s277 = scalar_select %p276, %s21, 1
      %p278 = scmp.lt.s32.totalorder %s275, 17
      %s279 = scalar_select %p278, %s275, 17
      %s280 = smul.addr %s279, 3
      %s281 = smul.addr %s277, 54
      %s282 = sadd.s32 %s280, %s281
      %s283 = smul.addr %s282, 4
      %s284 = scalar_lea.vmem %s1, %s283
      %p285 = pneg %p84
      %p286 = pneg %p81
      %p287 = pneg %p105
      %p288 = pneg %p102
      %p289 = pneg %p126
      %p290 = pneg %p123
      %p291 = pneg %p154
      %p292 = pneg %p151
      %s293 = smul.u32 16, %s22
      %p294 = scmp.lt.s32.totalorder %s21, 1
      %s295 = scalar_select %p294, %s21, 1
      %p296 = scmp.lt.s32.totalorder %s293, 31
      %s297 = scalar_select %p296, %s293, 31
      %s298 = smul.addr %s297, 2
      %s299 = smul.addr %s295, 64
      %s300 = sadd.s32 %s298, %s299
      %s301 = smul.addr %s300, 4
      %s302 = scalar_lea.vmem %s4, %s301
      %p303 = pneg %p182
      %p304 = pneg %p179
      %s305 = smul.u32 16, %s22
      %p306 = scmp.lt.s32.totalorder %s21, 1
      %s307 = scalar_select %p306, %s21, 1
      %p308 = scmp.lt.s32.totalorder %s305, 31
      %s309 = scalar_select %p308, %s305, 31
      %s310 = smul.addr %s309, 2
      %s311 = smul.addr %s307, 64
      %s312 = sadd.s32 %s310, %s311
      %s313 = smul.addr %s312, 4
      %s314 = scalar_lea.vmem %s5, %s313
      %s315 = smul.u32 8, %s22
      %s316 = ssub.s32 18, %s315
      %p317 = scmp.lt.s32.totalorder %s316, 8
      %s318 = scalar_select %p317, %s316, 8
      %s319 = smul.u32 64, %s318
      %s320 = smul.u32 %s319, 3
      %p321 = scmp.lt.s32.totalorder %s21, 1
      %s322 = scalar_select %p321, %s21, 1
      %p323 = scmp.lt.s32.totalorder %s315, 17
      %s324 = scalar_select %p323, %s315, 17
      %s325 = smul.addr %s324, 3
      %s326 = smul.addr %s322, 54
      %s327 = sadd.s32 %s325, %s326
      %s328 = smul.addr %s327, 4
      %s329 = scalar_lea.vmem %s0, %s328
      %s330 = smul.u32 8, %s22
      %s331 = ssub.s32 18, %s330
      %p332 = scmp.lt.s32.totalorder %s331, 8
      %s333 = scalar_select %p332, %s331, 8
      %s334 = smul.u32 64, %s333
      %s335 = smul.u32 %s334, 3
      %s336 = sadd.s32 %s22, 1
      %s337 = smul.u32 %s336, 4
      %s338 = smul.u32 2, %s337
      %p339 = scmp.lt.s32.totalorder %s21, 1
      %s340 = scalar_select %p339, %s21, 1
      %p341 = scmp.lt.s32.totalorder %s338, 17
      %s342 = scalar_select %p341, %s338, 17
      %s343 = smul.addr %s342, 3
      %s344 = smul.addr %s340, 54
      %s345 = sadd.s32 %s343, %s344
      %s346 = smul.addr %s345, 4
      %s347 = scalar_lea.vmem %s1, %s346
      %s348 = sadd.s32 %s22, 1
      %s349 = smul.u32 %s348, 4
      %s350 = smul.u32 2, %s349
      %s351 = smul.u32 16, %s22
      %p352 = scmp.lt.s32.totalorder %s21, 1
      %s353 = scalar_select %p352, %s21, 1
      %p354 = scmp.lt.s32.totalorder %s351, 31
      %s355 = scalar_select %p354, %s351, 31
      %s356 = smul.addr %s355, 2
      %s357 = smul.addr %s353, 64
      %s358 = sadd.s32 %s356, %s357
      %s359 = smul.addr %s358, 4
      %s360 = scalar_lea.vmem %s4, %s359
      %s361 = smul.u32 16, %s22
      %s362 = smul.u32 16, %s22
      %p363 = scmp.lt.s32.totalorder %s21, 1
      %s364 = scalar_select %p363, %s21, 1
      %p365 = scmp.lt.s32.totalorder %s362, 31
      %s366 = scalar_select %p365, %s362, 31
      %s367 = smul.addr %s366, 2
      %s368 = smul.addr %s364, 64
      %s369 = sadd.s32 %s367, %s368
      %s370 = smul.addr %s369, 4
      %s371 = scalar_lea.vmem %s5, %s370
      %s372 = smul.u32 16, %s22
      %v374 = vld [vmem:[%s329] sm:$0xf]
      %v375 = vld [vmem:[%s329 + $0x4] sm:$0xf]
      %v376 = vld [vmem:[%s329 + $0x8] sm:$0x1]
      %v377 = vld [vmem:[%s329 + $0xc] sm:$0xf]
      %v378 = vld [vmem:[%s329 + $0x10] sm:$0xf]
      %v379 = vld [vmem:[%s329 + $0x14] sm:$0x1]
      %v380 = vld [vmem:[%s329 + $0x18] sm:$0xf]
      %v381 = vld [vmem:[%s329 + $0x1c] sm:$0xf]
      %v382 = vld [vmem:[%s329 + $0x20] sm:$0x1]
      %v383 = vld [vmem:[%s329 + $0x24] sm:$0xf]
      %v384 = vld [vmem:[%s329 + $0x28] sm:$0xf]
      %v385 = vld [vmem:[%s329 + $0x2c] sm:$0x1]
      %v386 = vld [vmem:[%s329 + $0x30] sm:$0xf]
      %v387 = vld [vmem:[%s329 + $0x34] sm:$0xf]
      %v388 = vld [vmem:[%s329 + $0x38] sm:$0x1]
      %v389 = vld [vmem:[%s329 + $0x3c] sm:$0xf]
      %v390 = vld [vmem:[%s329 + $0x40] sm:$0xf]
      %v391 = vld [vmem:[%s329 + $0x44] sm:$0x1]
      %v392 = vld [vmem:[%s329 + $0x48] sm:$0xf]
      %v393 = vld [vmem:[%s329 + $0x4c] sm:$0xf]
      %v394 = vld [vmem:[%s329 + $0x50] sm:$0x1]
      %v395 = vld [vmem:[%s329 + $0x54] sm:$0xf]
      %v396 = vld [vmem:[%s329 + $0x58] sm:$0xf]
      %v397 = vld [vmem:[%s329 + $0x5c] sm:$0x1]
      %v398 = vld [vmem:[%s347] sm:$0xf]
      %v399 = vld [vmem:[%s347 + $0x4] sm:$0xf]
      %v400 = vld [vmem:[%s347 + $0x8] sm:$0x1]
      %v401 = vld [vmem:[%s347 + $0xc] sm:$0xf]
      %v402 = vld [vmem:[%s347 + $0x10] sm:$0xf]
      %v403 = vld [vmem:[%s347 + $0x14] sm:$0x1]
      %v404 = vld [vmem:[%s3] sm:$0x1]
      %v421 = vunpack.c.l.b16 %v374
      %v422 = vunpack.c.l.b16 %v375
      %v423 = vunpack.c.l.b16 %v377
      %v424 = vunpack.c.l.b16 %v378
      %v425 = vunpack.c.l.b16 %v380
      %v426 = vunpack.c.l.b16 %v381
      %v427 = vunpack.c.l.b16 %v383
      %v428 = vunpack.c.l.b16 %v384
      %v429 = vunpack.c.l.b16 %v386
      %v430 = vunpack.c.l.b16 %v387
      %v431 = vunpack.c.l.b16 %v389
      %v432 = vunpack.c.l.b16 %v390
      %v433 = vunpack.c.l.b16 %v392
      %v434 = vunpack.c.l.b16 %v393
      %v435 = vunpack.c.l.b16 %v395
      %v436 = vunpack.c.l.b16 %v396
      %v437 = vpack.c.b16 %v422, %v421
      %v438 = vpack.c.b16 %v424, %v423
      %v439 = vpack.c.b16 %v426, %v425
      %v440 = vpack.c.b16 %v428, %v427
      %v441 = vpack.c.b16 %v430, %v429
      %v442 = vpack.c.b16 %v432, %v431
      %v443 = vpack.c.b16 %v434, %v433
      %v444 = vpack.c.b16 %v436, %v435
      %v461 = vunpack.c.l.b16 %v376
      %v462 = vunpack.c.l.b16 %v379
      %v463 = vunpack.c.l.b16 %v382
      %v464 = vunpack.c.l.b16 %v385
      %v465 = vunpack.c.l.b16 %v388
      %v466 = vunpack.c.l.b16 %v391
      %v467 = vunpack.c.l.b16 %v394
      %v468 = vunpack.c.l.b16 %v397
      %v469 = vpack.c.b16 %v461, %v461
      %v470 = vpack.c.b16 %v462, %v462
      %v471 = vpack.c.b16 %v463, %v463
      %v472 = vpack.c.b16 %v464, %v464
      %v473 = vpack.c.b16 %v465, %v465
      %v474 = vpack.c.b16 %v466, %v466
      %v475 = vpack.c.b16 %v467, %v467
      %v476 = vpack.c.b16 %v468, %v468
      %vm477 = vsmask.f32 7424
      %v479 = vshrl.u32 %v437, 16
      %v481 = vshll.u32 %v437, 16
      %v483 = vrot.slane %v481, 1
      %v484 = vor.u32 %v479, %v483
      %v486 = vshll.u32 %v469, 16
      %v488 = vrot.slane %v486, 1
      %v489 = vsel %vm477, %v484, %v488
      %v491 = vshrl.u32 %v438, 16
      %v493 = vshll.u32 %v438, 16
      %v495 = vrot.slane %v493, 1
      %v496 = vor.u32 %v491, %v495
      %v498 = vshll.u32 %v470, 16
      %v500 = vrot.slane %v498, 1
      %v501 = vsel %vm477, %v496, %v500
      %v503 = vshrl.u32 %v439, 16
      %v505 = vshll.u32 %v439, 16
      %v507 = vrot.slane %v505, 1
      %v508 = vor.u32 %v503, %v507
      %v510 = vshll.u32 %v471, 16
      %v512 = vrot.slane %v510, 1
      %v513 = vsel %vm477, %v508, %v512
      %v515 = vshrl.u32 %v440, 16
      %v517 = vshll.u32 %v440, 16
      %v519 = vrot.slane %v517, 1
      %v520 = vor.u32 %v515, %v519
      %v522 = vshll.u32 %v472, 16
      %v524 = vrot.slane %v522, 1
      %v525 = vsel %vm477, %v520, %v524
      %v527 = vshrl.u32 %v441, 16
      %v529 = vshll.u32 %v441, 16
      %v531 = vrot.slane %v529, 1
      %v532 = vor.u32 %v527, %v531
      %v534 = vshll.u32 %v473, 16
      %v536 = vrot.slane %v534, 1
      %v537 = vsel %vm477, %v532, %v536
      %v539 = vshrl.u32 %v442, 16
      %v541 = vshll.u32 %v442, 16
      %v543 = vrot.slane %v541, 1
      %v544 = vor.u32 %v539, %v543
      %v546 = vshll.u32 %v474, 16
      %v548 = vrot.slane %v546, 1
      %v549 = vsel %vm477, %v544, %v548
      %v551 = vshrl.u32 %v443, 16
      %v553 = vshll.u32 %v443, 16
      %v555 = vrot.slane %v553, 1
      %v556 = vor.u32 %v551, %v555
      %v558 = vshll.u32 %v475, 16
      %v560 = vrot.slane %v558, 1
      %v561 = vsel %vm477, %v556, %v560
      %v563 = vshrl.u32 %v444, 16
      %v565 = vshll.u32 %v444, 16
      %v567 = vrot.slane %v565, 1
      %v568 = vor.u32 %v563, %v567
      %v570 = vshll.u32 %v476, 16
      %v572 = vrot.slane %v570, 1
      %v573 = vsel %vm477, %v568, %v572
      %v584 = vunpack.c.l.b16 %v398
      %v585 = vunpack.c.l.b16 %v399
      %v586 = vpack.c.b16 %v585, %v584
      %v589 = vunpack.c.l.b16 %v400
      %v590 = vpack.c.b16 %v589, %v589
      %v592 = vshrl.u32 %v586, 16
      %v594 = vshll.u32 %v586, 16
      %v596 = vrot.slane %v594, 1
      %v597 = vor.u32 %v592, %v596
      %v599 = vshll.u32 %v590, 16
      %v601 = vrot.slane %v599, 1
      %v602 = vsel %vm477, %v597, %v601
      %v604 = vld [vmem:[%s2] sm:$0xf]
      %v605 = vld [vmem:[%s2 + $0x4] sm:$0xf]
      %v606 = vld [vmem:[%s2 + $0x8] sm:$0xf]
      %v607 = vld [vmem:[%s2 + $0xc] sm:$0xf]
      %v608 = vld [vmem:[%s2 + $0x10] sm:$0xf]
      %v609 = vld [vmem:[%s2 + $0x14] sm:$0xf]
      %v610 = vld [vmem:[%s2 + $0x18] sm:$0xf]
      %v611 = vld [vmem:[%s2 + $0x1c] sm:$0xf]
      %v612 = vld [vmem:[%s2 + $0x20] sm:$0xf]
      %v613 = vld [vmem:[%s2 + $0x24] sm:$0xf]
      %v614 = vld [vmem:[%s2 + $0x28] sm:$0xf]
      %v615 = vld [vmem:[%s2 + $0x2c] sm:$0xf]
      %v616 = vld [vmem:[%s2 + $0x30] sm:$0xf]
      %v617 = vld [vmem:[%s2 + $0x34] sm:$0xf]
      %v618 = vld [vmem:[%s2 + $0x38] sm:$0xf]
      %v619 = vld [vmem:[%s2 + $0x3c] sm:$0xf]
      %v620 = vld [vmem:[%s2 + $0x40] sm:$0xf]
      %v621 = vld [vmem:[%s2 + $0x44] sm:$0xf]
      %v622 = vld [vmem:[%s2 + $0x48] sm:$0xf]
      %v623 = vld [vmem:[%s2 + $0x4c] sm:$0xf]
      %v624 = vld [vmem:[%s2 + $0x50] sm:$0xf]
      %v625 = vld [vmem:[%s2 + $0x54] sm:$0xf]
      %v626 = vld [vmem:[%s2 + $0x58] sm:$0xf]
      %v627 = vld [vmem:[%s2 + $0x5c] sm:$0xf]
      %v628 = vld [vmem:[%s2 + $0x60] sm:$0xf]
      %v629 = vld [vmem:[%s2 + $0x64] sm:$0xf]
      %v630 = vld [vmem:[%s2 + $0x68] sm:$0xf]
      %v631 = vld [vmem:[%s2 + $0x6c] sm:$0xf]
      %v632 = vld [vmem:[%s2 + $0x70] sm:$0xf]
      %v633 = vld [vmem:[%s2 + $0x74] sm:$0xf]
      %v634 = vld [vmem:[%s2 + $0x78] sm:$0xf]
      %v635 = vld [vmem:[%s2 + $0x7c] sm:$0xf]
      %v636 = vld [vmem:[%s2 + $0x80] sm:$0xf]
      %v637 = vld [vmem:[%s2 + $0x84] sm:$0xf]
      %v638 = vld [vmem:[%s2 + $0x88] sm:$0xf]
      %v639 = vld [vmem:[%s2 + $0x8c] sm:$0xf]
      %v640 = vld [vmem:[%s2 + $0x90] sm:$0xf]
      %v641 = vld [vmem:[%s2 + $0x94] sm:$0xf]
      %v642 = vld [vmem:[%s2 + $0x98] sm:$0xf]
      %v643 = vld [vmem:[%s2 + $0x9c] sm:$0xf]
      %v644 = vld [vmem:[%s2 + $0xa0] sm:$0xf]
      %v645 = vld [vmem:[%s2 + $0xa4] sm:$0xf]
      %v646 = vld [vmem:[%s2 + $0xa8] sm:$0xf]
      %v647 = vld [vmem:[%s2 + $0xac] sm:$0xf]
      %v648 = vld [vmem:[%s2 + $0xb0] sm:$0xf]
      %v649 = vld [vmem:[%s2 + $0xb4] sm:$0xf]
      %v650 = vld [vmem:[%s2 + $0xb8] sm:$0xf]
      %v651 = vld [vmem:[%s2 + $0xbc] sm:$0xf]
      %v652 = vld [vmem:[%s2 + $0xc0] sm:$0xf]
      %v653 = vld [vmem:[%s2 + $0xc4] sm:$0xf]
      %v654 = vld [vmem:[%s2 + $0xc8] sm:$0xf]
      %v655 = vld [vmem:[%s2 + $0xcc] sm:$0xf]
      %v656 = vld [vmem:[%s2 + $0xd0] sm:$0xf]
      %v657 = vld [vmem:[%s2 + $0xd4] sm:$0xf]
      %v658 = vld [vmem:[%s2 + $0xd8] sm:$0xf]
      %v659 = vld [vmem:[%s2 + $0xdc] sm:$0xf]
      %v660 = vld [vmem:[%s2 + $0xe0] sm:$0xf]
      %v661 = vld [vmem:[%s2 + $0xe4] sm:$0xf]
      %v662 = vld [vmem:[%s2 + $0xe8] sm:$0xf]
      %v663 = vld [vmem:[%s2 + $0xec] sm:$0xf]
      %v664 = vld [vmem:[%s2 + $0xf0] sm:$0xf]
      %v665 = vld [vmem:[%s2 + $0xf4] sm:$0xf]
      %v666 = vld [vmem:[%s2 + $0xf8] sm:$0xf]
      %v667 = vld [vmem:[%s2 + $0xfc] sm:$0xf]
      %v732 = vunpack.c.l.b16 %v604
      %v733 = vunpack.c.l.b16 %v605
      %v734 = vunpack.c.l.b16 %v606
      %v735 = vunpack.c.l.b16 %v607
      %v736 = vunpack.c.l.b16 %v608
      %v737 = vunpack.c.l.b16 %v609
      %v738 = vunpack.c.l.b16 %v610
      %v739 = vunpack.c.l.b16 %v611
      %v740 = vunpack.c.l.b16 %v612
      %v741 = vunpack.c.l.b16 %v613
      %v742 = vunpack.c.l.b16 %v614
      %v743 = vunpack.c.l.b16 %v615
      %v744 = vunpack.c.l.b16 %v616
      %v745 = vunpack.c.l.b16 %v617
      %v746 = vunpack.c.l.b16 %v618
      %v747 = vunpack.c.l.b16 %v619
      %v748 = vunpack.c.l.b16 %v620
      %v749 = vunpack.c.l.b16 %v621
      %v750 = vunpack.c.l.b16 %v622
      %v751 = vunpack.c.l.b16 %v623
      %v752 = vunpack.c.l.b16 %v624
      %v753 = vunpack.c.l.b16 %v625
      %v754 = vunpack.c.l.b16 %v626
      %v755 = vunpack.c.l.b16 %v627
      %v756 = vunpack.c.l.b16 %v628
      %v757 = vunpack.c.l.b16 %v629
      %v758 = vunpack.c.l.b16 %v630
      %v759 = vunpack.c.l.b16 %v631
      %v760 = vunpack.c.l.b16 %v632
      %v761 = vunpack.c.l.b16 %v633
      %v762 = vunpack.c.l.b16 %v634
      %v763 = vunpack.c.l.b16 %v635
      %v764 = vunpack.c.l.b16 %v636
      %v765 = vunpack.c.l.b16 %v637
      %v766 = vunpack.c.l.b16 %v638
      %v767 = vunpack.c.l.b16 %v639
      %v768 = vunpack.c.l.b16 %v640
      %v769 = vunpack.c.l.b16 %v641
      %v770 = vunpack.c.l.b16 %v642
      %v771 = vunpack.c.l.b16 %v643
      %v772 = vunpack.c.l.b16 %v644
      %v773 = vunpack.c.l.b16 %v645
      %v774 = vunpack.c.l.b16 %v646
      %v775 = vunpack.c.l.b16 %v647
      %v776 = vunpack.c.l.b16 %v648
      %v777 = vunpack.c.l.b16 %v649
      %v778 = vunpack.c.l.b16 %v650
      %v779 = vunpack.c.l.b16 %v651
      %v780 = vunpack.c.l.b16 %v652
      %v781 = vunpack.c.l.b16 %v653
      %v782 = vunpack.c.l.b16 %v654
      %v783 = vunpack.c.l.b16 %v655
      %v784 = vunpack.c.l.b16 %v656
      %v785 = vunpack.c.l.b16 %v657
      %v786 = vunpack.c.l.b16 %v658
      %v787 = vunpack.c.l.b16 %v659
      %v788 = vunpack.c.l.b16 %v660
      %v789 = vunpack.c.l.b16 %v661
      %v790 = vunpack.c.l.b16 %v662
      %v791 = vunpack.c.l.b16 %v663
      %v792 = vunpack.c.l.b16 %v664
      %v793 = vunpack.c.l.b16 %v665
      %v794 = vunpack.c.l.b16 %v666
      %v795 = vunpack.c.l.b16 %v667
      %v796 = vpack.c.b16 %v733, %v732
      %v797 = vpack.c.b16 %v735, %v734
      %v798 = vpack.c.b16 %v737, %v736
      %v799 = vpack.c.b16 %v739, %v738
      %v800 = vpack.c.b16 %v741, %v740
      %v801 = vpack.c.b16 %v743, %v742
      %v802 = vpack.c.b16 %v745, %v744
      %v803 = vpack.c.b16 %v747, %v746
      %v804 = vpack.c.b16 %v749, %v748
      %v805 = vpack.c.b16 %v751, %v750
      %v806 = vpack.c.b16 %v753, %v752
      %v807 = vpack.c.b16 %v755, %v754
      %v808 = vpack.c.b16 %v757, %v756
      %v809 = vpack.c.b16 %v759, %v758
      %v810 = vpack.c.b16 %v761, %v760
      %v811 = vpack.c.b16 %v763, %v762
      %v812 = vpack.c.b16 %v765, %v764
      %v813 = vpack.c.b16 %v767, %v766
      %v814 = vpack.c.b16 %v769, %v768
      %v815 = vpack.c.b16 %v771, %v770
      %v816 = vpack.c.b16 %v773, %v772
      %v817 = vpack.c.b16 %v775, %v774
      %v818 = vpack.c.b16 %v777, %v776
      %v819 = vpack.c.b16 %v779, %v778
      %v820 = vpack.c.b16 %v781, %v780
      %v821 = vpack.c.b16 %v783, %v782
      %v822 = vpack.c.b16 %v785, %v784
      %v823 = vpack.c.b16 %v787, %v786
      %v824 = vpack.c.b16 %v789, %v788
      %v825 = vpack.c.b16 %v791, %v790
      %v826 = vpack.c.b16 %v793, %v792
      %v827 = vpack.c.b16 %v795, %v794
      %860 = vmatprep.subr.bf16.mxu0 0
      %861 = vmatpush1.bf16.msra.mxu0 %v796
      %862 = vmatprep.subr.bf16.mxu0 0
      %863 = vmatpush1.bf16.msra.mxu0 %v797
      %864 = vmatprep.subr.bf16.mxu0 0
      %865 = vmatpush1.bf16.msra.mxu0 %v798
      %866 = vmatprep.subr.bf16.mxu0 0
      %867 = vmatpush1.bf16.msra.mxu0 %v799
      %868 = vmatprep.subr.bf16.mxu0 0
      %869 = vmatpush1.bf16.msra.mxu0 %v800
      %870 = vmatprep.subr.bf16.mxu0 0
      %871 = vmatpush1.bf16.msra.mxu0 %v801
      %872 = vmatprep.subr.bf16.mxu0 0
      %873 = vmatpush1.bf16.msra.mxu0 %v802
      %874 = vmatprep.subr.bf16.mxu0 0
      %875 = vmatpush1.bf16.msra.mxu0 %v803
      %876 = vmatprep.subr.bf16.mxu0 0
      %877 = vmatpush1.bf16.msra.mxu0 %v804
      %878 = vmatprep.subr.bf16.mxu0 0
      %879 = vmatpush1.bf16.msra.mxu0 %v805
      %880 = vmatprep.subr.bf16.mxu0 0
      %881 = vmatpush1.bf16.msra.mxu0 %v806
      %882 = vmatprep.subr.bf16.mxu0 0
      %883 = vmatpush1.bf16.msra.mxu0 %v807
      %884 = vmatprep.subr.bf16.mxu0 0
      %885 = vmatpush1.bf16.msra.mxu0 %v808
      %886 = vmatprep.subr.bf16.mxu0 0
      %887 = vmatpush1.bf16.msra.mxu0 %v809
      %888 = vmatprep.subr.bf16.mxu0 0
      %889 = vmatpush1.bf16.msra.mxu0 %v810
      %890 = vmatprep.subr.bf16.mxu0 0
      %891 = vmatpush1.bf16.msra.mxu0 %v811
      %892 = vmatprep.mubr.bf16.mxu0 %v489
      %893 = vmatmul.mubr.bf16.gmra.mrb[0].mxu0 %v437
      %v894 = vpop.f32.mrb[0].mxu0
      %v895 = vadd.f32 0.0, %v894
      %v896 = vpop.f32.mrb[0].mxu0
      %v897 = vpop.f32.mrb[0].mxu0
      %v898 = vadd.f32 0.0, %v897
      %v899 = vpop.f32.mrb[0].mxu0
      %900 = vmatprep.mubr.bf16.mxu0 %v501
      %901 = vmatmul.mubr.bf16.gmra.mrb[0].mxu0 %v438
      %v902 = vpop.f32.mrb[0].mxu0
      %v903 = vadd.f32 0.0, %v902
      %v904 = vpop.f32.mrb[0].mxu0
      %v905 = vpop.f32.mrb[0].mxu0
      %v906 = vadd.f32 0.0, %v905
      %v907 = vpop.f32.mrb[0].mxu0
      %908 = vmatprep.mubr.bf16.mxu0 %v513
      %909 = vmatmul.mubr.bf16.gmra.mrb[0].mxu0 %v439
      %v910 = vpop.f32.mrb[0].mxu0
      %v911 = vadd.f32 0.0, %v910
      %v912 = vpop.f32.mrb[0].mxu0
      %v913 = vpop.f32.mrb[0].mxu0
      %v914 = vadd.f32 0.0, %v913
      %v915 = vpop.f32.mrb[0].mxu0
      %916 = vmatprep.mubr.bf16.mxu0 %v525
      %917 = vmatmul.mubr.bf16.gmra.mrb[0].mxu0 %v440
      %v918 = vpop.f32.mrb[0].mxu0
      %v919 = vadd.f32 0.0, %v918
      %v920 = vpop.f32.mrb[0].mxu0
      %v921 = vpop.f32.mrb[0].mxu0
      %v922 = vadd.f32 0.0, %v921
      %v923 = vpop.f32.mrb[0].mxu0
      %924 = vmatprep.mubr.bf16.mxu0 %v537
      %925 = vmatmul.mubr.bf16.gmra.mrb[0].mxu0 %v441
      %v926 = vpop.f32.mrb[0].mxu0
      %v927 = vadd.f32 0.0, %v926
      %v928 = vpop.f32.mrb[0].mxu0
      %v929 = vpop.f32.mrb[0].mxu0
      %v930 = vadd.f32 0.0, %v929
      %v931 = vpop.f32.mrb[0].mxu0
      %932 = vmatprep.mubr.bf16.mxu0 %v549
      %933 = vmatmul.mubr.bf16.gmra.mrb[0].mxu0 %v442
      %v934 = vpop.f32.mrb[0].mxu0
      %v935 = vadd.f32 0.0, %v934
      %v936 = vpop.f32.mrb[0].mxu0
      %v937 = vpop.f32.mrb[0].mxu0
      %v938 = vadd.f32 0.0, %v937
      %v939 = vpop.f32.mrb[0].mxu0
      %940 = vmatprep.mubr.bf16.mxu0 %v561
      %941 = vmatmul.mubr.bf16.gmra.mrb[0].mxu0 %v443
      %v942 = vpop.f32.mrb[0].mxu0
      %v943 = vadd.f32 0.0, %v942
      %v944 = vpop.f32.mrb[0].mxu0
      %v945 = vpop.f32.mrb[0].mxu0
      %v946 = vadd.f32 0.0, %v945
      %v947 = vpop.f32.mrb[0].mxu0
      %948 = vmatprep.mubr.bf16.mxu0 %v573
      %949 = vmatmul.mubr.bf16.gmra.mrb[0].mxu0 %v444
      %v950 = vpop.f32.mrb[0].mxu0
      %v951 = vadd.f32 0.0, %v950
      %v952 = vpop.f32.mrb[0].mxu0
      %v953 = vpop.f32.mrb[0].mxu0
      %v954 = vadd.f32 0.0, %v953
      %v955 = vpop.f32.mrb[0].mxu0
      %956 = vdwg.mxu0
      %957 = vmatprep.subr.bf16.mxu0 0
      %958 = vmatpush1.bf16.msra.mxu0 %v812
      %959 = vmatprep.subr.bf16.mxu0 0
      %960 = vmatpush1.bf16.msra.mxu0 %v813
      %961 = vmatprep.subr.bf16.mxu0 0
      %962 = vmatpush1.bf16.msra.mxu0 %v814
      %963 = vmatprep.subr.bf16.mxu0 0
      %964 = vmatpush1.bf16.msra.mxu0 %v815
      %965 = vmatprep.subr.bf16.mxu0 0
      %966 = vmatpush1.bf16.msra.mxu0 %v816
      %967 = vmatprep.subr.bf16.mxu0 0
      %968 = vmatpush1.bf16.msra.mxu0 %v817
      %969 = vmatprep.subr.bf16.mxu0 0
      %970 = vmatpush1.bf16.msra.mxu0 %v818
      %971 = vmatprep.subr.bf16.mxu0 0
      %972 = vmatpush1.bf16.msra.mxu0 %v819
      %973 = vmatprep.subr.bf16.mxu0 0
      %974 = vmatpush1.bf16.msra.mxu0 %v820
      %975 = vmatprep.subr.bf16.mxu0 0
      %976 = vmatpush1.bf16.msra.mxu0 %v821
      %977 = vmatprep.subr.bf16.mxu0 0
      %978 = vmatpush1.bf16.msra.mxu0 %v822
      %979 = vmatprep.subr.bf16.mxu0 0
      %980 = vmatpush1.bf16.msra.mxu0 %v823
      %981 = vmatprep.subr.bf16.mxu0 0
      %982 = vmatpush1.bf16.msra.mxu0 %v824
      %983 = vmatprep.subr.bf16.mxu0 0
      %984 = vmatpush1.bf16.msra.mxu0 %v825
      %985 = vmatprep.subr.bf16.mxu0 0
      %986 = vmatpush1.bf16.msra.mxu0 %v826
      %987 = vmatprep.subr.bf16.mxu0 0
      %988 = vmatpush1.bf16.msra.mxu0 %v827
      %989 = vmatprep.mubr.bf16.mxu0 %v501
      %990 = vmatmul.mubr.bf16.gmra.mrb[0].mxu0 %v438
      %v991 = vpop.f32.mrb[0].mxu0
      %v992 = vadd.f32 %v895, %v991
      %v993 = vpop.f32.mrb[0].mxu0
      %v994 = vpop.f32.mrb[0].mxu0
      %v995 = vadd.f32 %v898, %v994
      %v996 = vpop.f32.mrb[0].mxu0
      %997 = vmatprep.mubr.bf16.mxu0 %v513
      %998 = vmatmul.mubr.bf16.gmra.mrb[0].mxu0 %v439
      %v999 = vpop.f32.mrb[0].mxu0
      %v1000 = vadd.f32 %v903, %v999
      %v1001 = vpop.f32.mrb[0].mxu0
      %v1002 = vpop.f32.mrb[0].mxu0
      %v1003 = vadd.f32 %v906, %v1002
      %v1004 = vpop.f32.mrb[0].mxu0
      %1005 = vmatprep.mubr.bf16.mxu0 %v525
      %1006 = vmatmul.mubr.bf16.gmra.mrb[0].mxu0 %v440
      %v1007 = vpop.f32.mrb[0].mxu0
      %v1008 = vadd.f32 %v911, %v1007
      %v1009 = vpop.f32.mrb[0].mxu0
      %v1010 = vpop.f32.mrb[0].mxu0
      %v1011 = vadd.f32 %v914, %v1010
      %v1012 = vpop.f32.mrb[0].mxu0
      %1013 = vmatprep.mubr.bf16.mxu0 %v537
      %1014 = vmatmul.mubr.bf16.gmra.mrb[0].mxu0 %v441
      %v1015 = vpop.f32.mrb[0].mxu0
      %v1016 = vadd.f32 %v919, %v1015
      %v1017 = vpop.f32.mrb[0].mxu0
      %v1018 = vpop.f32.mrb[0].mxu0
      %v1019 = vadd.f32 %v922, %v1018
      %v1020 = vpop.f32.mrb[0].mxu0
      %1021 = vmatprep.mubr.bf16.mxu0 %v549
      %1022 = vmatmul.mubr.bf16.gmra.mrb[0].mxu0 %v442
      %v1023 = vpop.f32.mrb[0].mxu0
      %v1024 = vadd.f32 %v927, %v1023
      %v1025 = vpop.f32.mrb[0].mxu0
      %v1026 = vpop.f32.mrb[0].mxu0
      %v1027 = vadd.f32 %v930, %v1026
      %v1028 = vpop.f32.mrb[0].mxu0
      %1029 = vmatprep.mubr.bf16.mxu0 %v561
      %1030 = vmatmul.mubr.bf16.gmra.mrb[0].mxu0 %v443
      %v1031 = vpop.f32.mrb[0].mxu0
      %v1032 = vadd.f32 %v935, %v1031
      %v1033 = vpop.f32.mrb[0].mxu0
      %v1034 = vpop.f32.mrb[0].mxu0
      %v1035 = vadd.f32 %v938, %v1034
      %v1036 = vpop.f32.mrb[0].mxu0
      %1037 = vmatprep.mubr.bf16.mxu0 %v573
      %1038 = vmatmul.mubr.bf16.gmra.mrb[0].mxu0 %v444
      %v1039 = vpop.f32.mrb[0].mxu0
      %v1040 = vadd.f32 %v943, %v1039
      %v1041 = vpop.f32.mrb[0].mxu0
      %v1042 = vpop.f32.mrb[0].mxu0
      %v1043 = vadd.f32 %v946, %v1042
      %v1044 = vpop.f32.mrb[0].mxu0
      %1045 = vmatprep.mubr.bf16.mxu0 %v602
      %1046 = vmatmul.mubr.bf16.gmra.mrb[0].mxu0 %v586
      %v1047 = vpop.f32.mrb[0].mxu0
      %v1048 = vadd.f32 %v951, %v1047
      %v1049 = vpop.f32.mrb[0].mxu0
      %v1050 = vpop.f32.mrb[0].mxu0
      %v1051 = vadd.f32 %v954, %v1050
      %v1052 = vpop.f32.mrb[0].mxu0
      %1053 = vdwg.mxu0
      %v1056 = vunpack.c.l.b16 %v401
      %v1057 = vunpack.c.l.b16 %v402
      %v1058 = vpack.c.b16 %v1057, %v1056
      %v1061 = vunpack.c.l.b16 %v403
      %v1062 = vpack.c.b16 %v1061, %v1061
      %v1064 = vshrl.u32 %v1058, 16
      %v1066 = vshll.u32 %v1058, 16
      %v1068 = vrot.slane %v1066, 1
      %v1069 = vor.u32 %v1064, %v1068
      %v1071 = vshll.u32 %v1062, 16
      %v1073 = vrot.slane %v1071, 1
      %v1074 = vsel %vm477, %v1069, %v1073
      %s1076 = scalar_lea.vmem %s2, 512
      %v1077 = vld [vmem:[%s1076] sm:$0xf]
      %v1078 = vld [vmem:[%s1076 + $0x4] sm:$0xf]
      %v1079 = vld [vmem:[%s1076 + $0x8] sm:$0xf]
      %v1080 = vld [vmem:[%s1076 + $0xc] sm:$0xf]
      %v1081 = vld [vmem:[%s1076 + $0x10] sm:$0xf]
      %v1082 = vld [vmem:[%s1076 + $0x14] sm:$0xf]
      %v1083 = vld [vmem:[%s1076 + $0x18] sm:$0xf]
      %v1084 = vld [vmem:[%s1076 + $0x1c] sm:$0xf]
      %v1085 = vld [vmem:[%s1076 + $0x20] sm:$0xf]
      %v1086 = vld [vmem:[%s1076 + $0x24] sm:$0xf]
      %v1087 = vld [vmem:[%s1076 + $0x28] sm:$0xf]
      %v1088 = vld [vmem:[%s1076 + $0x2c] sm:$0xf]
      %v1089 = vld [vmem:[%s1076 + $0x30] sm:$0xf]
      %v1090 = vld [vmem:[%s1076 + $0x34] sm:$0xf]
      %v1091 = vld [vmem:[%s1076 + $0x38] sm:$0xf]
      %v1092 = vld [vmem:[%s1076 + $0x3c] sm:$0xf]
      %v1093 = vld [vmem:[%s1076 + $0x40] sm:$0xf]
      %v1094 = vld [vmem:[%s1076 + $0x44] sm:$0xf]
      %v1095 = vld [vmem:[%s1076 + $0x48] sm:$0xf]
      %v1096 = vld [vmem:[%s1076 + $0x4c] sm:$0xf]
      %v1097 = vld [vmem:[%s1076 + $0x50] sm:$0xf]
      %v1098 = vld [vmem:[%s1076 + $0x54] sm:$0xf]
      %v1099 = vld [vmem:[%s1076 + $0x58] sm:$0xf]
      %v1100 = vld [vmem:[%s1076 + $0x5c] sm:$0xf]
      %v1101 = vld [vmem:[%s1076 + $0x60] sm:$0xf]
      %v1102 = vld [vmem:[%s1076 + $0x64] sm:$0xf]
      %v1103 = vld [vmem:[%s1076 + $0x68] sm:$0xf]
      %v1104 = vld [vmem:[%s1076 + $0x6c] sm:$0xf]
      %v1105 = vld [vmem:[%s1076 + $0x70] sm:$0xf]
      %v1106 = vld [vmem:[%s1076 + $0x74] sm:$0xf]
      %v1107 = vld [vmem:[%s1076 + $0x78] sm:$0xf]
      %v1108 = vld [vmem:[%s1076 + $0x7c] sm:$0xf]
      %v1109 = vld [vmem:[%s1076 + $0x80] sm:$0xf]
      %v1110 = vld [vmem:[%s1076 + $0x84] sm:$0xf]
      %v1111 = vld [vmem:[%s1076 + $0x88] sm:$0xf]
      %v1112 = vld [vmem:[%s1076 + $0x8c] sm:$0xf]
      %v1113 = vld [vmem:[%s1076 + $0x90] sm:$0xf]
      %v1114 = vld [vmem:[%s1076 + $0x94] sm:$0xf]
      %v1115 = vld [vmem:[%s1076 + $0x98] sm:$0xf]
      %v1116 = vld [vmem:[%s1076 + $0x9c] sm:$0xf]
      %v1117 = vld [vmem:[%s1076 + $0xa0] sm:$0xf]
      %v1118 = vld [vmem:[%s1076 + $0xa4] sm:$0xf]
      %v1119 = vld [vmem:[%s1076 + $0xa8] sm:$0xf]
      %v1120 = vld [vmem:[%s1076 + $0xac] sm:$0xf]
      %v1121 = vld [vmem:[%s1076 + $0xb0] sm:$0xf]
      %v1122 = vld [vmem:[%s1076 + $0xb4] sm:$0xf]
      %v1123 = vld [vmem:[%s1076 + $0xb8] sm:$0xf]
      %v1124 = vld [vmem:[%s1076 + $0xbc] sm:$0xf]
      %v1125 = vld [vmem:[%s1076 + $0xc0] sm:$0xf]
      %v1126 = vld [vmem:[%s1076 + $0xc4] sm:$0xf]
      %v1127 = vld [vmem:[%s1076 + $0xc8] sm:$0xf]
      %v1128 = vld [vmem:[%s1076 + $0xcc] sm:$0xf]
      %v1129 = vld [vmem:[%s1076 + $0xd0] sm:$0xf]
      %v1130 = vld [vmem:[%s1076 + $0xd4] sm:$0xf]
      %v1131 = vld [vmem:[%s1076 + $0xd8] sm:$0xf]
      %v1132 = vld [vmem:[%s1076 + $0xdc] sm:$0xf]
      %v1133 = vld [vmem:[%s1076 + $0xe0] sm:$0xf]
      %v1134 = vld [vmem:[%s1076 + $0xe4] sm:$0xf]
      %v1135 = vld [vmem:[%s1076 + $0xe8] sm:$0xf]
      %v1136 = vld [vmem:[%s1076 + $0xec] sm:$0xf]
      %v1137 = vld [vmem:[%s1076 + $0xf0] sm:$0xf]
      %v1138 = vld [vmem:[%s1076 + $0xf4] sm:$0xf]
      %v1139 = vld [vmem:[%s1076 + $0xf8] sm:$0xf]
      %v1140 = vld [vmem:[%s1076 + $0xfc] sm:$0xf]
      %v1205 = vunpack.c.l.b16 %v1077
      %v1206 = vunpack.c.l.b16 %v1078
      %v1207 = vunpack.c.l.b16 %v1079
      %v1208 = vunpack.c.l.b16 %v1080
      %v1209 = vunpack.c.l.b16 %v1081
      %v1210 = vunpack.c.l.b16 %v1082
      %v1211 = vunpack.c.l.b16 %v1083
      %v1212 = vunpack.c.l.b16 %v1084
      %v1213 = vunpack.c.l.b16 %v1085
      %v1214 = vunpack.c.l.b16 %v1086
      %v1215 = vunpack.c.l.b16 %v1087
      %v1216 = vunpack.c.l.b16 %v1088
      %v1217 = vunpack.c.l.b16 %v1089
      %v1218 = vunpack.c.l.b16 %v1090
      %v1219 = vunpack.c.l.b16 %v1091
      %v1220 = vunpack.c.l.b16 %v1092
      %v1221 = vunpack.c.l.b16 %v1093
      %v1222 = vunpack.c.l.b16 %v1094
      %v1223 = vunpack.c.l.b16 %v1095
      %v1224 = vunpack.c.l.b16 %v1096
      %v1225 = vunpack.c.l.b16 %v1097
      %v1226 = vunpack.c.l.b16 %v1098
      %v1227 = vunpack.c.l.b16 %v1099
      %v1228 = vunpack.c.l.b16 %v1100
      %v1229 = vunpack.c.l.b16 %v1101
      %v1230 = vunpack.c.l.b16 %v1102
      %v1231 = vunpack.c.l.b16 %v1103
      %v1232 = vunpack.c.l.b16 %v1104
      %v1233 = vunpack.c.l.b16 %v1105
      %v1234 = vunpack.c.l.b16 %v1106
      %v1235 = vunpack.c.l.b16 %v1107
      %v1236 = vunpack.c.l.b16 %v1108
      %v1237 = vunpack.c.l.b16 %v1109
      %v1238 = vunpack.c.l.b16 %v1110
      %v1239 = vunpack.c.l.b16 %v1111
      %v1240 = vunpack.c.l.b16 %v1112
      %v1241 = vunpack.c.l.b16 %v1113
      %v1242 = vunpack.c.l.b16 %v1114
      %v1243 = vunpack.c.l.b16 %v1115
      %v1244 = vunpack.c.l.b16 %v1116
      %v1245 = vunpack.c.l.b16 %v1117
      %v1246 = vunpack.c.l.b16 %v1118
      %v1247 = vunpack.c.l.b16 %v1119
      %v1248 = vunpack.c.l.b16 %v1120
      %v1249 = vunpack.c.l.b16 %v1121
      %v1250 = vunpack.c.l.b16 %v1122
      %v1251 = vunpack.c.l.b16 %v1123
      %v1252 = vunpack.c.l.b16 %v1124
      %v1253 = vunpack.c.l.b16 %v1125
      %v1254 = vunpack.c.l.b16 %v1126
      %v1255 = vunpack.c.l.b16 %v1127
      %v1256 = vunpack.c.l.b16 %v1128
      %v1257 = vunpack.c.l.b16 %v1129
      %v1258 = vunpack.c.l.b16 %v1130
      %v1259 = vunpack.c.l.b16 %v1131
      %v1260 = vunpack.c.l.b16 %v1132
      %v1261 = vunpack.c.l.b16 %v1133
      %v1262 = vunpack.c.l.b16 %v1134
      %v1263 = vunpack.c.l.b16 %v1135
      %v1264 = vunpack.c.l.b16 %v1136
      %v1265 = vunpack.c.l.b16 %v1137
      %v1266 = vunpack.c.l.b16 %v1138
      %v1267 = vunpack.c.l.b16 %v1139
      %v1268 = vunpack.c.l.b16 %v1140
      %v1269 = vpack.c.b16 %v1206, %v1205
      %v1270 = vpack.c.b16 %v1208, %v1207
      %v1271 = vpack.c.b16 %v1210, %v1209
      %v1272 = vpack.c.b16 %v1212, %v1211
      %v1273 = vpack.c.b16 %v1214, %v1213
      %v1274 = vpack.c.b16 %v1216, %v1215
      %v1275 = vpack.c.b16 %v1218, %v1217
      %v1276 = vpack.c.b16 %v1220, %v1219
      %v1277 = vpack.c.b16 %v1222, %v1221
      %v1278 = vpack.c.b16 %v1224, %v1223
      %v1279 = vpack.c.b16 %v1226, %v1225
      %v1280 = vpack.c.b16 %v1228, %v1227
      %v1281 = vpack.c.b16 %v1230, %v1229
      %v1282 = vpack.c.b16 %v1232, %v1231
      %v1283 = vpack.c.b16 %v1234, %v1233
      %v1284 = vpack.c.b16 %v1236, %v1235
      %v1285 = vpack.c.b16 %v1238, %v1237
      %v1286 = vpack.c.b16 %v1240, %v1239
      %v1287 = vpack.c.b16 %v1242, %v1241
      %v1288 = vpack.c.b16 %v1244, %v1243
      %v1289 = vpack.c.b16 %v1246, %v1245
      %v1290 = vpack.c.b16 %v1248, %v1247
      %v1291 = vpack.c.b16 %v1250, %v1249
      %v1292 = vpack.c.b16 %v1252, %v1251
      %v1293 = vpack.c.b16 %v1254, %v1253
      %v1294 = vpack.c.b16 %v1256, %v1255
      %v1295 = vpack.c.b16 %v1258, %v1257
      %v1296 = vpack.c.b16 %v1260, %v1259
      %v1297 = vpack.c.b16 %v1262, %v1261
      %v1298 = vpack.c.b16 %v1264, %v1263
      %v1299 = vpack.c.b16 %v1266, %v1265
      %v1300 = vpack.c.b16 %v1268, %v1267
      %1333 = vmatprep.subr.bf16.mxu0 0
      %1334 = vmatpush1.bf16.msra.mxu0 %v1269
      %1335 = vmatprep.subr.bf16.mxu0 0
      %1336 = vmatpush1.bf16.msra.mxu0 %v1270
      %1337 = vmatprep.subr.bf16.mxu0 0
      %1338 = vmatpush1.bf16.msra.mxu0 %v1271
      %1339 = vmatprep.subr.bf16.mxu0 0
      %1340 = vmatpush1.bf16.msra.mxu0 %v1272
      %1341 = vmatprep.subr.bf16.mxu0 0
      %1342 = vmatpush1.bf16.msra.mxu0 %v1273
      %1343 = vmatprep.subr.bf16.mxu0 0
      %1344 = vmatpush1.bf16.msra.mxu0 %v1274
      %1345 = vmatprep.subr.bf16.mxu0 0
      %1346 = vmatpush1.bf16.msra.mxu0 %v1275
      %1347 = vmatprep.subr.bf16.mxu0 0
      %1348 = vmatpush1.bf16.msra.mxu0 %v1276
      %1349 = vmatprep.subr.bf16.mxu0 0
      %1350 = vmatpush1.bf16.msra.mxu0 %v1277
      %1351 = vmatprep.subr.bf16.mxu0 0
      %1352 = vmatpush1.bf16.msra.mxu0 %v1278
      %1353 = vmatprep.subr.bf16.mxu0 0
      %1354 = vmatpush1.bf16.msra.mxu0 %v1279
      %1355 = vmatprep.subr.bf16.mxu0 0
      %1356 = vmatpush1.bf16.msra.mxu0 %v1280
      %1357 = vmatprep.subr.bf16.mxu0 0
      %1358 = vmatpush1.bf16.msra.mxu0 %v1281
      %1359 = vmatprep.subr.bf16.mxu0 0
      %1360 = vmatpush1.bf16.msra.mxu0 %v1282
      %1361 = vmatprep.subr.bf16.mxu0 0
      %1362 = vmatpush1.bf16.msra.mxu0 %v1283
      %1363 = vmatprep.subr.bf16.mxu0 0
      %1364 = vmatpush1.bf16.msra.mxu0 %v1284
      %1365 = vmatprep.mubr.bf16.mxu0 %v501
      %1366 = vmatmul.mubr.bf16.gmra.mrb[0].mxu0 %v438
      %v1367 = vpop.f32.mrb[0].mxu0
      %v1368 = vadd.f32 0.0, %v1367
      %v1369 = vpop.f32.mrb[0].mxu0
      %v1370 = vpop.f32.mrb[0].mxu0
      %v1371 = vadd.f32 0.0, %v1370
      %v1372 = vpop.f32.mrb[0].mxu0
      %1373 = vmatprep.mubr.bf16.mxu0 %v513
      %1374 = vmatmul.mubr.bf16.gmra.mrb[0].mxu0 %v439
      %v1375 = vpop.f32.mrb[0].mxu0
      %v1376 = vadd.f32 0.0, %v1375
      %v1377 = vpop.f32.mrb[0].mxu0
      %v1378 = vpop.f32.mrb[0].mxu0
      %v1379 = vadd.f32 0.0, %v1378
      %v1380 = vpop.f32.mrb[0].mxu0
      %1381 = vmatprep.mubr.bf16.mxu0 %v525
      %1382 = vmatmul.mubr.bf16.gmra.mrb[0].mxu0 %v440
      %v1383 = vpop.f32.mrb[0].mxu0
      %v1384 = vadd.f32 0.0, %v1383
      %v1385 = vpop.f32.mrb[0].mxu0
      %v1386 = vpop.f32.mrb[0].mxu0
      %v1387 = vadd.f32 0.0, %v1386
      %v1388 = vpop.f32.mrb[0].mxu0
      %1389 = vmatprep.mubr.bf16.mxu0 %v537
      %1390 = vmatmul.mubr.bf16.gmra.mrb[0].mxu0 %v441
      %v1391 = vpop.f32.mrb[0].mxu0
      %v1392 = vadd.f32 0.0, %v1391
      %v1393 = vpop.f32.mrb[0].mxu0
      %v1394 = vpop.f32.mrb[0].mxu0
      %v1395 = vadd.f32 0.0, %v1394
      %v1396 = vpop.f32.mrb[0].mxu0
      %1397 = vmatprep.mubr.bf16.mxu0 %v549
      %1398 = vmatmul.mubr.bf16.gmra.mrb[0].mxu0 %v442
      %v1399 = vpop.f32.mrb[0].mxu0
      %v1400 = vadd.f32 0.0, %v1399
      %v1401 = vpop.f32.mrb[0].mxu0
      %v1402 = vpop.f32.mrb[0].mxu0
      %v1403 = vadd.f32 0.0, %v1402
      %v1404 = vpop.f32.mrb[0].mxu0
      %1405 = vmatprep.mubr.bf16.mxu0 %v561
      %1406 = vmatmul.mubr.bf16.gmra.mrb[0].mxu0 %v443
      %v1407 = vpop.f32.mrb[0].mxu0
      %v1408 = vadd.f32 0.0, %v1407
      %v1409 = vpop.f32.mrb[0].mxu0
      %v1410 = vpop.f32.mrb[0].mxu0
      %v1411 = vadd.f32 0.0, %v1410
      %v1412 = vpop.f32.mrb[0].mxu0
      %1413 = vmatprep.mubr.bf16.mxu0 %v573
      %1414 = vmatmul.mubr.bf16.gmra.mrb[0].mxu0 %v444
      %v1415 = vpop.f32.mrb[0].mxu0
      %v1416 = vadd.f32 0.0, %v1415
      %v1417 = vpop.f32.mrb[0].mxu0
      %v1418 = vpop.f32.mrb[0].mxu0
      %v1419 = vadd.f32 0.0, %v1418
      %v1420 = vpop.f32.mrb[0].mxu0
      %1421 = vmatprep.mubr.bf16.mxu0 %v602
      %1422 = vmatmul.mubr.bf16.gmra.mrb[0].mxu0 %v586
      %v1423 = vpop.f32.mrb[0].mxu0
      %v1424 = vadd.f32 0.0, %v1423
      %v1425 = vpop.f32.mrb[0].mxu0
      %v1426 = vpop.f32.mrb[0].mxu0
      %v1427 = vadd.f32 0.0, %v1426
      %v1428 = vpop.f32.mrb[0].mxu0
      %1429 = vdwg.mxu0
      %1430 = vmatprep.subr.bf16.mxu0 0
      %1431 = vmatpush1.bf16.msra.mxu0 %v1285
      %1432 = vmatprep.subr.bf16.mxu0 0
      %1433 = vmatpush1.bf16.msra.mxu0 %v1286
      %1434 = vmatprep.subr.bf16.mxu0 0
      %1435 = vmatpush1.bf16.msra.mxu0 %v1287
      %1436 = vmatprep.subr.bf16.mxu0 0
      %1437 = vmatpush1.bf16.msra.mxu0 %v1288
      %1438 = vmatprep.subr.bf16.mxu0 0
      %1439 = vmatpush1.bf16.msra.mxu0 %v1289
      %1440 = vmatprep.subr.bf16.mxu0 0
      %1441 = vmatpush1.bf16.msra.mxu0 %v1290
      %1442 = vmatprep.subr.bf16.mxu0 0
      %1443 = vmatpush1.bf16.msra.mxu0 %v1291
      %1444 = vmatprep.subr.bf16.mxu0 0
      %1445 = vmatpush1.bf16.msra.mxu0 %v1292
      %1446 = vmatprep.subr.bf16.mxu0 0
      %1447 = vmatpush1.bf16.msra.mxu0 %v1293
      %1448 = vmatprep.subr.bf16.mxu0 0
      %1449 = vmatpush1.bf16.msra.mxu0 %v1294
      %1450 = vmatprep.subr.bf16.mxu0 0
      %1451 = vmatpush1.bf16.msra.mxu0 %v1295
      %1452 = vmatprep.subr.bf16.mxu0 0
      %1453 = vmatpush1.bf16.msra.mxu0 %v1296
      %1454 = vmatprep.subr.bf16.mxu0 0
      %1455 = vmatpush1.bf16.msra.mxu0 %v1297
      %1456 = vmatprep.subr.bf16.mxu0 0
      %1457 = vmatpush1.bf16.msra.mxu0 %v1298
      %1458 = vmatprep.subr.bf16.mxu0 0
      %1459 = vmatpush1.bf16.msra.mxu0 %v1299
      %1460 = vmatprep.subr.bf16.mxu0 0
      %1461 = vmatpush1.bf16.msra.mxu0 %v1300
      %1462 = vmatprep.mubr.bf16.mxu0 %v513
      %1463 = vmatmul.mubr.bf16.gmra.mrb[0].mxu0 %v439
      %v1464 = vpop.f32.mrb[0].mxu0
      %v1465 = vadd.f32 %v1368, %v1464
      %v1466 = vpop.f32.mrb[0].mxu0
      %v1467 = vpop.f32.mrb[0].mxu0
      %v1468 = vadd.f32 %v1371, %v1467
      %v1469 = vpop.f32.mrb[0].mxu0
      %1470 = vmatprep.mubr.bf16.mxu0 %v525
      %1471 = vmatmul.mubr.bf16.gmra.mrb[0].mxu0 %v440
      %v1472 = vpop.f32.mrb[0].mxu0
      %v1473 = vadd.f32 %v1376, %v1472
      %v1474 = vpop.f32.mrb[0].mxu0
      %v1475 = vpop.f32.mrb[0].mxu0
      %v1476 = vadd.f32 %v1379, %v1475
      %v1477 = vpop.f32.mrb[0].mxu0
      %1478 = vmatprep.mubr.bf16.mxu0 %v537
      %1479 = vmatmul.mubr.bf16.gmra.mrb[0].mxu0 %v441
      %v1480 = vpop.f32.mrb[0].mxu0
      %v1481 = vadd.f32 %v1384, %v1480
      %v1482 = vpop.f32.mrb[0].mxu0
      %v1483 = vpop.f32.mrb[0].mxu0
      %v1484 = vadd.f32 %v1387, %v1483
      %v1485 = vpop.f32.mrb[0].mxu0
      %1486 = vmatprep.mubr.bf16.mxu0 %v549
      %1487 = vmatmul.mubr.bf16.gmra.mrb[0].mxu0 %v442
      %v1488 = vpop.f32.mrb[0].mxu0
      %v1489 = vadd.f32 %v1392, %v1488
      %v1490 = vpop.f32.mrb[0].mxu0
      %v1491 = vpop.f32.mrb[0].mxu0
      %v1492 = vadd.f32 %v1395, %v1491
      %v1493 = vpop.f32.mrb[0].mxu0
      %1494 = vmatprep.mubr.bf16.mxu0 %v561
      %1495 = vmatmul.mubr.bf16.gmra.mrb[0].mxu0 %v443
      %v1496 = vpop.f32.mrb[0].mxu0
      %v1497 = vadd.f32 %v1400, %v1496
      %v1498 = vpop.f32.mrb[0].mxu0
      %v1499 = vpop.f32.mrb[0].mxu0
      %v1500 = vadd.f32 %v1403, %v1499
      %v1501 = vpop.f32.mrb[0].mxu0
      %1502 = vmatprep.mubr.bf16.mxu0 %v573
      %1503 = vmatmul.mubr.bf16.gmra.mrb[0].mxu0 %v444
      %v1504 = vpop.f32.mrb[0].mxu0
      %v1505 = vadd.f32 %v1408, %v1504
      %v1506 = vpop.f32.mrb[0].mxu0
      %v1507 = vpop.f32.mrb[0].mxu0
      %v1508 = vadd.f32 %v1411, %v1507
      %v1509 = vpop.f32.mrb[0].mxu0
      %1510 = vmatprep.mubr.bf16.mxu0 %v602
      %1511 = vmatmul.mubr.bf16.gmra.mrb[0].mxu0 %v586
      %v1512 = vpop.f32.mrb[0].mxu0
      %v1513 = vadd.f32 %v1416, %v1512
      %v1514 = vpop.f32.mrb[0].mxu0
      %v1515 = vpop.f32.mrb[0].mxu0
      %v1516 = vadd.f32 %v1419, %v1515
      %v1517 = vpop.f32.mrb[0].mxu0
      %1518 = vmatprep.mubr.bf16.mxu0 %v1074
      %1519 = vmatmul.mubr.bf16.gmra.mrb[0].mxu0 %v1058
      %v1520 = vpop.f32.mrb[0].mxu0
      %v1521 = vadd.f32 %v1424, %v1520
      %v1522 = vpop.f32.mrb[0].mxu0
      %v1523 = vpop.f32.mrb[0].mxu0
      %v1524 = vadd.f32 %v1427, %v1523
      %v1525 = vpop.f32.mrb[0].mxu0
      %1526 = vdwg.mxu0
      %v1528 = vlaneseq
      %v1529 = vshrl.u32 %v1528, 7
      %v1530 = vsub.s32 0, %v1529
      %v1531 = vrot.slane %v404, %v1530
      %v1533 = vadd.f32 %v992, %v1531
      %v1534 = vadd.f32 %v995, %v1531
      %v1535 = vadd.f32 %v1465, %v1531
      %v1536 = vadd.f32 %v1468, %v1531
      %v1537 = vadd.f32 %v1000, %v1531
      %v1538 = vadd.f32 %v1003, %v1531
      %v1539 = vadd.f32 %v1473, %v1531
      %v1540 = vadd.f32 %v1476, %v1531
      %v1541 = vadd.f32 %v1008, %v1531
      %v1542 = vadd.f32 %v1011, %v1531
      %v1543 = vadd.f32 %v1481, %v1531
      %v1544 = vadd.f32 %v1484, %v1531
      %v1545 = vadd.f32 %v1016, %v1531
      %v1546 = vadd.f32 %v1019, %v1531
      %v1547 = vadd.f32 %v1489, %v1531
      %v1548 = vadd.f32 %v1492, %v1531
      %v1549 = vadd.f32 %v1024, %v1531
      %v1550 = vadd.f32 %v1027, %v1531
      %v1551 = vadd.f32 %v1497, %v1531
      %v1552 = vadd.f32 %v1500, %v1531
      %v1553 = vadd.f32 %v1032, %v1531
      %v1554 = vadd.f32 %v1035, %v1531
      %v1555 = vadd.f32 %v1505, %v1531
      %v1556 = vadd.f32 %v1508, %v1531
      %v1557 = vadd.f32 %v1040, %v1531
      %v1558 = vadd.f32 %v1043, %v1531
      %v1559 = vadd.f32 %v1513, %v1531
      %v1560 = vadd.f32 %v1516, %v1531
      %v1561 = vadd.f32 %v1048, %v1531
      %v1562 = vadd.f32 %v1051, %v1531
      %v1563 = vadd.f32 %v1521, %v1531
      %v1564 = vadd.f32 %v1524, %v1531
      %v1565 = vpack.c.bf16 %v1534, %v1533
      %v1566 = vpack.c.bf16 %v1536, %v1535
      %v1567 = vpack.c.bf16 %v1538, %v1537
      %v1568 = vpack.c.bf16 %v1540, %v1539
      %v1569 = vpack.c.bf16 %v1542, %v1541
      %v1570 = vpack.c.bf16 %v1544, %v1543
      %v1571 = vpack.c.bf16 %v1546, %v1545
      %v1572 = vpack.c.bf16 %v1548, %v1547
      %v1573 = vpack.c.bf16 %v1550, %v1549
      %v1574 = vpack.c.bf16 %v1552, %v1551
      %v1575 = vpack.c.bf16 %v1554, %v1553
      %v1576 = vpack.c.bf16 %v1556, %v1555
      %v1577 = vpack.c.bf16 %v1558, %v1557
      %v1578 = vpack.c.bf16 %v1560, %v1559
      %v1579 = vpack.c.bf16 %v1562, %v1561
      %v1580 = vpack.c.bf16 %v1564, %v1563
      %v1597 = vunpack.c.l.b16 %v1565
      %v1598 = vunpack.c.h.b16 %v1565
      %v1599 = vunpack.c.l.b16 %v1566
      %v1600 = vunpack.c.h.b16 %v1566
      %v1601 = vunpack.c.l.b16 %v1567
      %v1602 = vunpack.c.h.b16 %v1567
      %v1603 = vunpack.c.l.b16 %v1568
      %v1604 = vunpack.c.h.b16 %v1568
      %v1605 = vunpack.c.l.b16 %v1569
      %v1606 = vunpack.c.h.b16 %v1569
      %v1607 = vunpack.c.l.b16 %v1570
      %v1608 = vunpack.c.h.b16 %v1570
      %v1609 = vunpack.c.l.b16 %v1571
      %v1610 = vunpack.c.h.b16 %v1571
      %v1611 = vunpack.c.l.b16 %v1572
      %v1612 = vunpack.c.h.b16 %v1572
      %v1613 = vunpack.c.l.b16 %v1573
      %v1614 = vunpack.c.h.b16 %v1573
      %v1615 = vunpack.c.l.b16 %v1574
      %v1616 = vunpack.c.h.b16 %v1574
      %v1617 = vunpack.c.l.b16 %v1575
      %v1618 = vunpack.c.h.b16 %v1575
      %v1619 = vunpack.c.l.b16 %v1576
      %v1620 = vunpack.c.h.b16 %v1576
      %v1621 = vunpack.c.l.b16 %v1577
      %v1622 = vunpack.c.h.b16 %v1577
      %v1623 = vunpack.c.l.b16 %v1578
      %v1624 = vunpack.c.h.b16 %v1578
      %v1625 = vunpack.c.l.b16 %v1579
      %v1626 = vunpack.c.h.b16 %v1579
      %v1627 = vunpack.c.l.b16 %v1580
      %v1628 = vunpack.c.h.b16 %v1580
      %v1629 = vpack.c.b16 %v1597, %v1597
      %v1630 = vpack.c.b16 %v1598, %v1598
      %v1631 = vpack.c.b16 %v1599, %v1599
      %v1632 = vpack.c.b16 %v1600, %v1600
      %v1633 = vpack.c.b16 %v1601, %v1601
      %v1634 = vpack.c.b16 %v1602, %v1602
      %v1635 = vpack.c.b16 %v1603, %v1603
      %v1636 = vpack.c.b16 %v1604, %v1604
      %v1637 = vpack.c.b16 %v1605, %v1605
      %v1638 = vpack.c.b16 %v1606, %v1606
      %v1639 = vpack.c.b16 %v1607, %v1607
      %v1640 = vpack.c.b16 %v1608, %v1608
      %v1641 = vpack.c.b16 %v1609, %v1609
      %v1642 = vpack.c.b16 %v1610, %v1610
      %v1643 = vpack.c.b16 %v1611, %v1611
      %v1644 = vpack.c.b16 %v1612, %v1612
      %v1645 = vpack.c.b16 %v1613, %v1613
      %v1646 = vpack.c.b16 %v1614, %v1614
      %v1647 = vpack.c.b16 %v1615, %v1615
      %v1648 = vpack.c.b16 %v1616, %v1616
      %v1649 = vpack.c.b16 %v1617, %v1617
      %v1650 = vpack.c.b16 %v1618, %v1618
      %v1651 = vpack.c.b16 %v1619, %v1619
      %v1652 = vpack.c.b16 %v1620, %v1620
      %v1653 = vpack.c.b16 %v1621, %v1621
      %v1654 = vpack.c.b16 %v1622, %v1622
      %v1655 = vpack.c.b16 %v1623, %v1623
      %v1656 = vpack.c.b16 %v1624, %v1624
      %v1657 = vpack.c.b16 %v1625, %v1625
      %v1658 = vpack.c.b16 %v1626, %v1626
      %v1659 = vpack.c.b16 %v1627, %v1627
      %v1660 = vpack.c.b16 %v1628, %v1628
      %1693 = vst [vmem:[%s360] sm:$0xf] %v1629
      %1694 = vst [vmem:[%s360 + $0x4] sm:$0xf] %v1630
      %1695 = vst [vmem:[%s360 + $0x8] sm:$0xf] %v1631
      %1696 = vst [vmem:[%s360 + $0xc] sm:$0xf] %v1632
      %1697 = vst [vmem:[%s360 + $0x10] sm:$0xf] %v1633
      %1698 = vst [vmem:[%s360 + $0x14] sm:$0xf] %v1634
      %1699 = vst [vmem:[%s360 + $0x18] sm:$0xf] %v1635
      %1700 = vst [vmem:[%s360 + $0x1c] sm:$0xf] %v1636
      %1701 = vst [vmem:[%s360 + $0x20] sm:$0xf] %v1637
      %1702 = vst [vmem:[%s360 + $0x24] sm:$0xf] %v1638
      %1703 = vst [vmem:[%s360 + $0x28] sm:$0xf] %v1639
      %1704 = vst [vmem:[%s360 + $0x2c] sm:$0xf] %v1640
      %1705 = vst [vmem:[%s360 + $0x30] sm:$0xf] %v1641
      %1706 = vst [vmem:[%s360 + $0x34] sm:$0xf] %v1642
      %1707 = vst [vmem:[%s360 + $0x38] sm:$0xf] %v1643
      %1708 = vst [vmem:[%s360 + $0x3c] sm:$0xf] %v1644
      %1709 = vst [vmem:[%s360 + $0x40] sm:$0xf] %v1645
      %1710 = vst [vmem:[%s360 + $0x44] sm:$0xf] %v1646
      %1711 = vst [vmem:[%s360 + $0x48] sm:$0xf] %v1647
      %1712 = vst [vmem:[%s360 + $0x4c] sm:$0xf] %v1648
      %1713 = vst [vmem:[%s360 + $0x50] sm:$0xf] %v1649
      %1714 = vst [vmem:[%s360 + $0x54] sm:$0xf] %v1650
      %1715 = vst [vmem:[%s360 + $0x58] sm:$0xf] %v1651
      %1716 = vst [vmem:[%s360 + $0x5c] sm:$0xf] %v1652
      %1717 = vst [vmem:[%s360 + $0x60] sm:$0xf] %v1653
      %1718 = vst [vmem:[%s360 + $0x64] sm:$0xf] %v1654
      %1719 = vst [vmem:[%s360 + $0x68] sm:$0xf] %v1655
      %1720 = vst [vmem:[%s360 + $0x6c] sm:$0xf] %v1656
      %1721 = vst [vmem:[%s360 + $0x70] sm:$0xf] %v1657
      %1722 = vst [vmem:[%s360 + $0x74] sm:$0xf] %v1658
      %1723 = vst [vmem:[%s360 + $0x78] sm:$0xf] %v1659
      %1724 = vst [vmem:[%s360 + $0x7c] sm:$0xf] %v1660
      %v1725 = vshrl.u32 %v469, 16
      %v1727 = vshrl.u32 %v470, 16
      %v1729 = vshrl.u32 %v471, 16
      %v1731 = vshrl.u32 %v472, 16
      %v1733 = vshrl.u32 %v473, 16
      %v1735 = vshrl.u32 %v474, 16
      %v1737 = vshrl.u32 %v475, 16
      %v1739 = vshrl.u32 %v476, 16
      %v1741 = vshrl.u32 %v590, 16
      %v1744 = vshrl.u32 %v489, 16
      %v1746 = vshll.u32 %v489, 16
      %v1748 = vrot.slane %v1746, 1
      %v1749 = vor.u32 %v1744, %v1748
      %v1751 = vshll.u32 %v1725, 16
      %v1753 = vrot.slane %v1751, 1
      %v1754 = vsel %vm477, %v1749, %v1753
      %v1756 = vshrl.u32 %v501, 16
      %v1758 = vshll.u32 %v501, 16
      %v1760 = vrot.slane %v1758, 1
      %v1761 = vor.u32 %v1756, %v1760
      %v1763 = vshll.u32 %v1727, 16
      %v1765 = vrot.slane %v1763, 1
      %v1766 = vsel %vm477, %v1761, %v1765
      %v1768 = vshrl.u32 %v513, 16
      %v1770 = vshll.u32 %v513, 16
      %v1772 = vrot.slane %v1770, 1
      %v1773 = vor.u32 %v1768, %v1772
      %v1775 = vshll.u32 %v1729, 16
      %v1777 = vrot.slane %v1775, 1
      %v1778 = vsel %vm477, %v1773, %v1777
      %v1780 = vshrl.u32 %v525, 16
      %v1782 = vshll.u32 %v525, 16
      %v1784 = vrot.slane %v1782, 1
      %v1785 = vor.u32 %v1780, %v1784
      %v1787 = vshll.u32 %v1731, 16
      %v1789 = vrot.slane %v1787, 1
      %v1790 = vsel %vm477, %v1785, %v1789
      %v1792 = vshrl.u32 %v537, 16
      %v1794 = vshll.u32 %v537, 16
      %v1796 = vrot.slane %v1794, 1
      %v1797 = vor.u32 %v1792, %v1796
      %v1799 = vshll.u32 %v1733, 16
      %v1801 = vrot.slane %v1799, 1
      %v1802 = vsel %vm477, %v1797, %v1801
      %v1804 = vshrl.u32 %v549, 16
      %v1806 = vshll.u32 %v549, 16
      %v1808 = vrot.slane %v1806, 1
      %v1809 = vor.u32 %v1804, %v1808
      %v1811 = vshll.u32 %v1735, 16
      %v1813 = vrot.slane %v1811, 1
      %v1814 = vsel %vm477, %v1809, %v1813
      %v1816 = vshrl.u32 %v561, 16
      %v1818 = vshll.u32 %v561, 16
      %v1820 = vrot.slane %v1818, 1
      %v1821 = vor.u32 %v1816, %v1820
      %v1823 = vshll.u32 %v1737, 16
      %v1825 = vrot.slane %v1823, 1
      %v1826 = vsel %vm477, %v1821, %v1825
      %v1828 = vshrl.u32 %v573, 16
      %v1830 = vshll.u32 %v573, 16
      %v1832 = vrot.slane %v1830, 1
      %v1833 = vor.u32 %v1828, %v1832
      %v1835 = vshll.u32 %v1739, 16
      %v1837 = vrot.slane %v1835, 1
      %v1838 = vsel %vm477, %v1833, %v1837
      %v1840 = vshrl.u32 %v602, 16
      %v1842 = vshll.u32 %v602, 16
      %v1844 = vrot.slane %v1842, 1
      %v1845 = vor.u32 %v1840, %v1844
      %v1847 = vshll.u32 %v1741, 16
      %v1849 = vrot.slane %v1847, 1
      %v1850 = vsel %vm477, %v1845, %v1849
      %s1860 = scalar_lea.vmem %s2, 256
      %v1861 = vld [vmem:[%s1860] sm:$0xf]
      %v1862 = vld [vmem:[%s1860 + $0x4] sm:$0xf]
      %v1863 = vld [vmem:[%s1860 + $0x8] sm:$0xf]
      %v1864 = vld [vmem:[%s1860 + $0xc] sm:$0xf]
      %v1865 = vld [vmem:[%s1860 + $0x10] sm:$0xf]
      %v1866 = vld [vmem:[%s1860 + $0x14] sm:$0xf]
      %v1867 = vld [vmem:[%s1860 + $0x18] sm:$0xf]
      %v1868 = vld [vmem:[%s1860 + $0x1c] sm:$0xf]
      %v1869 = vld [vmem:[%s1860 + $0x20] sm:$0xf]
      %v1870 = vld [vmem:[%s1860 + $0x24] sm:$0xf]
      %v1871 = vld [vmem:[%s1860 + $0x28] sm:$0xf]
      %v1872 = vld [vmem:[%s1860 + $0x2c] sm:$0xf]
      %v1873 = vld [vmem:[%s1860 + $0x30] sm:$0xf]
      %v1874 = vld [vmem:[%s1860 + $0x34] sm:$0xf]
      %v1875 = vld [vmem:[%s1860 + $0x38] sm:$0xf]
      %v1876 = vld [vmem:[%s1860 + $0x3c] sm:$0xf]
      %v1877 = vld [vmem:[%s1860 + $0x40] sm:$0xf]
      %v1878 = vld [vmem:[%s1860 + $0x44] sm:$0xf]
      %v1879 = vld [vmem:[%s1860 + $0x48] sm:$0xf]
      %v1880 = vld [vmem:[%s1860 + $0x4c] sm:$0xf]
      %v1881 = vld [vmem:[%s1860 + $0x50] sm:$0xf]
      %v1882 = vld [vmem:[%s1860 + $0x54] sm:$0xf]
      %v1883 = vld [vmem:[%s1860 + $0x58] sm:$0xf]
      %v1884 = vld [vmem:[%s1860 + $0x5c] sm:$0xf]
      %v1885 = vld [vmem:[%s1860 + $0x60] sm:$0xf]
      %v1886 = vld [vmem:[%s1860 + $0x64] sm:$0xf]
      %v1887 = vld [vmem:[%s1860 + $0x68] sm:$0xf]
      %v1888 = vld [vmem:[%s1860 + $0x6c] sm:$0xf]
      %v1889 = vld [vmem:[%s1860 + $0x70] sm:$0xf]
      %v1890 = vld [vmem:[%s1860 + $0x74] sm:$0xf]
      %v1891 = vld [vmem:[%s1860 + $0x78] sm:$0xf]
      %v1892 = vld [vmem:[%s1860 + $0x7c] sm:$0xf]
      %v1893 = vld [vmem:[%s1860 + $0x80] sm:$0xf]
      %v1894 = vld [vmem:[%s1860 + $0x84] sm:$0xf]
      %v1895 = vld [vmem:[%s1860 + $0x88] sm:$0xf]
      %v1896 = vld [vmem:[%s1860 + $0x8c] sm:$0xf]
      %v1897 = vld [vmem:[%s1860 + $0x90] sm:$0xf]
      %v1898 = vld [vmem:[%s1860 + $0x94] sm:$0xf]
      %v1899 = vld [vmem:[%s1860 + $0x98] sm:$0xf]
      %v1900 = vld [vmem:[%s1860 + $0x9c] sm:$0xf]
      %v1901 = vld [vmem:[%s1860 + $0xa0] sm:$0xf]
      %v1902 = vld [vmem:[%s1860 + $0xa4] sm:$0xf]
      %v1903 = vld [vmem:[%s1860 + $0xa8] sm:$0xf]
      %v1904 = vld [vmem:[%s1860 + $0xac] sm:$0xf]
      %v1905 = vld [vmem:[%s1860 + $0xb0] sm:$0xf]
      %v1906 = vld [vmem:[%s1860 + $0xb4] sm:$0xf]
      %v1907 = vld [vmem:[%s1860 + $0xb8] sm:$0xf]
      %v1908 = vld [vmem:[%s1860 + $0xbc] sm:$0xf]
      %v1909 = vld [vmem:[%s1860 + $0xc0] sm:$0xf]
      %v1910 = vld [vmem:[%s1860 + $0xc4] sm:$0xf]
      %v1911 = vld [vmem:[%s1860 + $0xc8] sm:$0xf]
      %v1912 = vld [vmem:[%s1860 + $0xcc] sm:$0xf]
      %v1913 = vld [vmem:[%s1860 + $0xd0] sm:$0xf]
      %v1914 = vld [vmem:[%s1860 + $0xd4] sm:$0xf]
      %v1915 = vld [vmem:[%s1860 + $0xd8] sm:$0xf]
      %v1916 = vld [vmem:[%s1860 + $0xdc] sm:$0xf]
      %v1917 = vld [vmem:[%s1860 + $0xe0] sm:$0xf]
      %v1918 = vld [vmem:[%s1860 + $0xe4] sm:$0xf]
      %v1919 = vld [vmem:[%s1860 + $0xe8] sm:$0xf]
      %v1920 = vld [vmem:[%s1860 + $0xec] sm:$0xf]
      %v1921 = vld [vmem:[%s1860 + $0xf0] sm:$0xf]
      %v1922 = vld [vmem:[%s1860 + $0xf4] sm:$0xf]
      %v1923 = vld [vmem:[%s1860 + $0xf8] sm:$0xf]
      %v1924 = vld [vmem:[%s1860 + $0xfc] sm:$0xf]
      %v1989 = vunpack.c.l.b16 %v1861
      %v1990 = vunpack.c.l.b16 %v1862
      %v1991 = vunpack.c.l.b16 %v1863
      %v1992 = vunpack.c.l.b16 %v1864
      %v1993 = vunpack.c.l.b16 %v1865
      %v1994 = vunpack.c.l.b16 %v1866
      %v1995 = vunpack.c.l.b16 %v1867
      %v1996 = vunpack.c.l.b16 %v1868
      %v1997 = vunpack.c.l.b16 %v1869
      %v1998 = vunpack.c.l.b16 %v1870
      %v1999 = vunpack.c.l.b16 %v1871
      %v2000 = vunpack.c.l.b16 %v1872
      %v2001 = vunpack.c.l.b16 %v1873
      %v2002 = vunpack.c.l.b16 %v1874
      %v2003 = vunpack.c.l.b16 %v1875
      %v2004 = vunpack.c.l.b16 %v1876
      %v2005 = vunpack.c.l.b16 %v1877
      %v2006 = vunpack.c.l.b16 %v1878
      %v2007 = vunpack.c.l.b16 %v1879
      %v2008 = vunpack.c.l.b16 %v1880
      %v2009 = vunpack.c.l.b16 %v1881
      %v2010 = vunpack.c.l.b16 %v1882
      %v2011 = vunpack.c.l.b16 %v1883
      %v2012 = vunpack.c.l.b16 %v1884
      %v2013 = vunpack.c.l.b16 %v1885
      %v2014 = vunpack.c.l.b16 %v1886
      %v2015 = vunpack.c.l.b16 %v1887
      %v2016 = vunpack.c.l.b16 %v1888
      %v2017 = vunpack.c.l.b16 %v1889
      %v2018 = vunpack.c.l.b16 %v1890
      %v2019 = vunpack.c.l.b16 %v1891
      %v2020 = vunpack.c.l.b16 %v1892
      %v2021 = vunpack.c.l.b16 %v1893
      %v2022 = vunpack.c.l.b16 %v1894
      %v2023 = vunpack.c.l.b16 %v1895
      %v2024 = vunpack.c.l.b16 %v1896
      %v2025 = vunpack.c.l.b16 %v1897
      %v2026 = vunpack.c.l.b16 %v1898
      %v2027 = vunpack.c.l.b16 %v1899
      %v2028 = vunpack.c.l.b16 %v1900
      %v2029 = vunpack.c.l.b16 %v1901
      %v2030 = vunpack.c.l.b16 %v1902
      %v2031 = vunpack.c.l.b16 %v1903
      %v2032 = vunpack.c.l.b16 %v1904
      %v2033 = vunpack.c.l.b16 %v1905
      %v2034 = vunpack.c.l.b16 %v1906
      %v2035 = vunpack.c.l.b16 %v1907
      %v2036 = vunpack.c.l.b16 %v1908
      %v2037 = vunpack.c.l.b16 %v1909
      %v2038 = vunpack.c.l.b16 %v1910
      %v2039 = vunpack.c.l.b16 %v1911
      %v2040 = vunpack.c.l.b16 %v1912
      %v2041 = vunpack.c.l.b16 %v1913
      %v2042 = vunpack.c.l.b16 %v1914
      %v2043 = vunpack.c.l.b16 %v1915
      %v2044 = vunpack.c.l.b16 %v1916
      %v2045 = vunpack.c.l.b16 %v1917
      %v2046 = vunpack.c.l.b16 %v1918
      %v2047 = vunpack.c.l.b16 %v1919
      %v2048 = vunpack.c.l.b16 %v1920
      %v2049 = vunpack.c.l.b16 %v1921
      %v2050 = vunpack.c.l.b16 %v1922
      %v2051 = vunpack.c.l.b16 %v1923
      %v2052 = vunpack.c.l.b16 %v1924
      %v2053 = vpack.c.b16 %v1990, %v1989
      %v2054 = vpack.c.b16 %v1992, %v1991
      %v2055 = vpack.c.b16 %v1994, %v1993
      %v2056 = vpack.c.b16 %v1996, %v1995
      %v2057 = vpack.c.b16 %v1998, %v1997
      %v2058 = vpack.c.b16 %v2000, %v1999
      %v2059 = vpack.c.b16 %v2002, %v2001
      %v2060 = vpack.c.b16 %v2004, %v2003
      %v2061 = vpack.c.b16 %v2006, %v2005
      %v2062 = vpack.c.b16 %v2008, %v2007
      %v2063 = vpack.c.b16 %v2010, %v2009
      %v2064 = vpack.c.b16 %v2012, %v2011
      %v2065 = vpack.c.b16 %v2014, %v2013
      %v2066 = vpack.c.b16 %v2016, %v2015
      %v2067 = vpack.c.b16 %v2018, %v2017
      %v2068 = vpack.c.b16 %v2020, %v2019
      %v2069 = vpack.c.b16 %v2022, %v2021
      %v2070 = vpack.c.b16 %v2024, %v2023
      %v2071 = vpack.c.b16 %v2026, %v2025
      %v2072 = vpack.c.b16 %v2028, %v2027
      %v2073 = vpack.c.b16 %v2030, %v2029
      %v2074 = vpack.c.b16 %v2032, %v2031
      %v2075 = vpack.c.b16 %v2034, %v2033
      %v2076 = vpack.c.b16 %v2036, %v2035
      %v2077 = vpack.c.b16 %v2038, %v2037
      %v2078 = vpack.c.b16 %v2040, %v2039
      %v2079 = vpack.c.b16 %v2042, %v2041
      %v2080 = vpack.c.b16 %v2044, %v2043
      %v2081 = vpack.c.b16 %v2046, %v2045
      %v2082 = vpack.c.b16 %v2048, %v2047
      %v2083 = vpack.c.b16 %v2050, %v2049
      %v2084 = vpack.c.b16 %v2052, %v2051
      %2117 = vmatprep.subr.bf16.mxu0 0
      %2118 = vmatpush1.bf16.msra.mxu0 %v2053
      %2119 = vmatprep.subr.bf16.mxu0 0
      %2120 = vmatpush1.bf16.msra.mxu0 %v2054
      %2121 = vmatprep.subr.bf16.mxu0 0
      %2122 = vmatpush1.bf16.msra.mxu0 %v2055
      %2123 = vmatprep.subr.bf16.mxu0 0
      %2124 = vmatpush1.bf16.msra.mxu0 %v2056
      %2125 = vmatprep.subr.bf16.mxu0 0
      %2126 = vmatpush1.bf16.msra.mxu0 %v2057
      %2127 = vmatprep.subr.bf16.mxu0 0
      %2128 = vmatpush1.bf16.msra.mxu0 %v2058
      %2129 = vmatprep.subr.bf16.mxu0 0
      %2130 = vmatpush1.bf16.msra.mxu0 %v2059
      %2131 = vmatprep.subr.bf16.mxu0 0
      %2132 = vmatpush1.bf16.msra.mxu0 %v2060
      %2133 = vmatprep.subr.bf16.mxu0 0
      %2134 = vmatpush1.bf16.msra.mxu0 %v2061
      %2135 = vmatprep.subr.bf16.mxu0 0
      %2136 = vmatpush1.bf16.msra.mxu0 %v2062
      %2137 = vmatprep.subr.bf16.mxu0 0
      %2138 = vmatpush1.bf16.msra.mxu0 %v2063
      %2139 = vmatprep.subr.bf16.mxu0 0
      %2140 = vmatpush1.bf16.msra.mxu0 %v2064
      %2141 = vmatprep.subr.bf16.mxu0 0
      %2142 = vmatpush1.bf16.msra.mxu0 %v2065
      %2143 = vmatprep.subr.bf16.mxu0 0
      %2144 = vmatpush1.bf16.msra.mxu0 %v2066
      %2145 = vmatprep.subr.bf16.mxu0 0
      %2146 = vmatpush1.bf16.msra.mxu0 %v2067
      %2147 = vmatprep.subr.bf16.mxu0 0
      %2148 = vmatpush1.bf16.msra.mxu0 %v2068
      %2149 = vmatprep.mubr.bf16.mxu0 %v1754
      %2150 = vmatmul.mubr.bf16.gmra.mrb[0].mxu0 %v489
      %v2151 = vpop.f32.mrb[0].mxu0
      %v2152 = vadd.f32 0.0, %v2151
      %v2153 = vpop.f32.mrb[0].mxu0
      %v2154 = vpop.f32.mrb[0].mxu0
      %v2155 = vadd.f32 0.0, %v2154
      %v2156 = vpop.f32.mrb[0].mxu0
      %2157 = vmatprep.mubr.bf16.mxu0 %v1766
      %2158 = vmatmul.mubr.bf16.gmra.mrb[0].mxu0 %v501
      %v2159 = vpop.f32.mrb[0].mxu0
      %v2160 = vadd.f32 0.0, %v2159
      %v2161 = vpop.f32.mrb[0].mxu0
      %v2162 = vpop.f32.mrb[0].mxu0
      %v2163 = vadd.f32 0.0, %v2162
      %v2164 = vpop.f32.mrb[0].mxu0
      %2165 = vmatprep.mubr.bf16.mxu0 %v1778
      %2166 = vmatmul.mubr.bf16.gmra.mrb[0].mxu0 %v513
      %v2167 = vpop.f32.mrb[0].mxu0
      %v2168 = vadd.f32 0.0, %v2167
      %v2169 = vpop.f32.mrb[0].mxu0
      %v2170 = vpop.f32.mrb[0].mxu0
      %v2171 = vadd.f32 0.0, %v2170
      %v2172 = vpop.f32.mrb[0].mxu0
      %2173 = vmatprep.mubr.bf16.mxu0 %v1790
      %2174 = vmatmul.mubr.bf16.gmra.mrb[0].mxu0 %v525
      %v2175 = vpop.f32.mrb[0].mxu0
      %v2176 = vadd.f32 0.0, %v2175
      %v2177 = vpop.f32.mrb[0].mxu0
      %v2178 = vpop.f32.mrb[0].mxu0
      %v2179 = vadd.f32 0.0, %v2178
      %v2180 = vpop.f32.mrb[0].mxu0
      %2181 = vmatprep.mubr.bf16.mxu0 %v1802
      %2182 = vmatmul.mubr.bf16.gmra.mrb[0].mxu0 %v537
      %v2183 = vpop.f32.mrb[0].mxu0
      %v2184 = vadd.f32 0.0, %v2183
      %v2185 = vpop.f32.mrb[0].mxu0
      %v2186 = vpop.f32.mrb[0].mxu0
      %v2187 = vadd.f32 0.0, %v2186
      %v2188 = vpop.f32.mrb[0].mxu0
      %2189 = vmatprep.mubr.bf16.mxu0 %v1814
      %2190 = vmatmul.mubr.bf16.gmra.mrb[0].mxu0 %v549
      %v2191 = vpop.f32.mrb[0].mxu0
      %v2192 = vadd.f32 0.0, %v2191
      %v2193 = vpop.f32.mrb[0].mxu0
      %v2194 = vpop.f32.mrb[0].mxu0
      %v2195 = vadd.f32 0.0, %v2194
      %v2196 = vpop.f32.mrb[0].mxu0
      %2197 = vmatprep.mubr.bf16.mxu0 %v1826
      %2198 = vmatmul.mubr.bf16.gmra.mrb[0].mxu0 %v561
      %v2199 = vpop.f32.mrb[0].mxu0
      %v2200 = vadd.f32 0.0, %v2199
      %v2201 = vpop.f32.mrb[0].mxu0
      %v2202 = vpop.f32.mrb[0].mxu0
      %v2203 = vadd.f32 0.0, %v2202
      %v2204 = vpop.f32.mrb[0].mxu0
      %2205 = vmatprep.mubr.bf16.mxu0 %v1838
      %2206 = vmatmul.mubr.bf16.gmra.mrb[0].mxu0 %v573
      %v2207 = vpop.f32.mrb[0].mxu0
      %v2208 = vadd.f32 0.0, %v2207
      %v2209 = vpop.f32.mrb[0].mxu0
      %v2210 = vpop.f32.mrb[0].mxu0
      %v2211 = vadd.f32 0.0, %v2210
      %v2212 = vpop.f32.mrb[0].mxu0
      %2213 = vdwg.mxu0
      %2214 = vmatprep.subr.bf16.mxu0 0
      %2215 = vmatpush1.bf16.msra.mxu0 %v2069
      %2216 = vmatprep.subr.bf16.mxu0 0
      %2217 = vmatpush1.bf16.msra.mxu0 %v2070
      %2218 = vmatprep.subr.bf16.mxu0 0
      %2219 = vmatpush1.bf16.msra.mxu0 %v2071
      %2220 = vmatprep.subr.bf16.mxu0 0
      %2221 = vmatpush1.bf16.msra.mxu0 %v2072
      %2222 = vmatprep.subr.bf16.mxu0 0
      %2223 = vmatpush1.bf16.msra.mxu0 %v2073
      %2224 = vmatprep.subr.bf16.mxu0 0
      %2225 = vmatpush1.bf16.msra.mxu0 %v2074
      %2226 = vmatprep.subr.bf16.mxu0 0
      %2227 = vmatpush1.bf16.msra.mxu0 %v2075
      %2228 = vmatprep.subr.bf16.mxu0 0
      %2229 = vmatpush1.bf16.msra.mxu0 %v2076
      %2230 = vmatprep.subr.bf16.mxu0 0
      %2231 = vmatpush1.bf16.msra.mxu0 %v2077
      %2232 = vmatprep.subr.bf16.mxu0 0
      %2233 = vmatpush1.bf16.msra.mxu0 %v2078
      %2234 = vmatprep.subr.bf16.mxu0 0
      %2235 = vmatpush1.bf16.msra.mxu0 %v2079
      %2236 = vmatprep.subr.bf16.mxu0 0
      %2237 = vmatpush1.bf16.msra.mxu0 %v2080
      %2238 = vmatprep.subr.bf16.mxu0 0
      %2239 = vmatpush1.bf16.msra.mxu0 %v2081
      %2240 = vmatprep.subr.bf16.mxu0 0
      %2241 = vmatpush1.bf16.msra.mxu0 %v2082
      %2242 = vmatprep.subr.bf16.mxu0 0
      %2243 = vmatpush1.bf16.msra.mxu0 %v2083
      %2244 = vmatprep.subr.bf16.mxu0 0
      %2245 = vmatpush1.bf16.msra.mxu0 %v2084
      %2246 = vmatprep.mubr.bf16.mxu0 %v1766
      %2247 = vmatmul.mubr.bf16.gmra.mrb[0].mxu0 %v501
      %v2248 = vpop.f32.mrb[0].mxu0
      %v2249 = vadd.f32 %v2152, %v2248
      %v2250 = vpop.f32.mrb[0].mxu0
      %v2251 = vpop.f32.mrb[0].mxu0
      %v2252 = vadd.f32 %v2155, %v2251
      %v2253 = vpop.f32.mrb[0].mxu0
      %2254 = vmatprep.mubr.bf16.mxu0 %v1778
      %2255 = vmatmul.mubr.bf16.gmra.mrb[0].mxu0 %v513
      %v2256 = vpop.f32.mrb[0].mxu0
      %v2257 = vadd.f32 %v2160, %v2256
      %v2258 = vpop.f32.mrb[0].mxu0
      %v2259 = vpop.f32.mrb[0].mxu0
      %v2260 = vadd.f32 %v2163, %v2259
      %v2261 = vpop.f32.mrb[0].mxu0
      %2262 = vmatprep.mubr.bf16.mxu0 %v1790
      %2263 = vmatmul.mubr.bf16.gmra.mrb[0].mxu0 %v525
      %v2264 = vpop.f32.mrb[0].mxu0
      %v2265 = vadd.f32 %v2168, %v2264
      %v2266 = vpop.f32.mrb[0].mxu0
      %v2267 = vpop.f32.mrb[0].mxu0
      %v2268 = vadd.f32 %v2171, %v2267
      %v2269 = vpop.f32.mrb[0].mxu0
      %2270 = vmatprep.mubr.bf16.mxu0 %v1802
      %2271 = vmatmul.mubr.bf16.gmra.mrb[0].mxu0 %v537
      %v2272 = vpop.f32.mrb[0].mxu0
      %v2273 = vadd.f32 %v2176, %v2272
      %v2274 = vpop.f32.mrb[0].mxu0
      %v2275 = vpop.f32.mrb[0].mxu0
      %v2276 = vadd.f32 %v2179, %v2275
      %v2277 = vpop.f32.mrb[0].mxu0
      %2278 = vmatprep.mubr.bf16.mxu0 %v1814
      %2279 = vmatmul.mubr.bf16.gmra.mrb[0].mxu0 %v549
      %v2280 = vpop.f32.mrb[0].mxu0
      %v2281 = vadd.f32 %v2184, %v2280
      %v2282 = vpop.f32.mrb[0].mxu0
      %v2283 = vpop.f32.mrb[0].mxu0
      %v2284 = vadd.f32 %v2187, %v2283
      %v2285 = vpop.f32.mrb[0].mxu0
      %2286 = vmatprep.mubr.bf16.mxu0 %v1826
      %2287 = vmatmul.mubr.bf16.gmra.mrb[0].mxu0 %v561
      %v2288 = vpop.f32.mrb[0].mxu0
      %v2289 = vadd.f32 %v2192, %v2288
      %v2290 = vpop.f32.mrb[0].mxu0
      %v2291 = vpop.f32.mrb[0].mxu0
      %v2292 = vadd.f32 %v2195, %v2291
      %v2293 = vpop.f32.mrb[0].mxu0
      %2294 = vmatprep.mubr.bf16.mxu0 %v1838
      %2295 = vmatmul.mubr.bf16.gmra.mrb[0].mxu0 %v573
      %v2296 = vpop.f32.mrb[0].mxu0
      %v2297 = vadd.f32 %v2200, %v2296
      %v2298 = vpop.f32.mrb[0].mxu0
      %v2299 = vpop.f32.mrb[0].mxu0
      %v2300 = vadd.f32 %v2203, %v2299
      %v2301 = vpop.f32.mrb[0].mxu0
      %2302 = vmatprep.mubr.bf16.mxu0 %v1850
      %2303 = vmatmul.mubr.bf16.gmra.mrb[0].mxu0 %v602
      %v2304 = vpop.f32.mrb[0].mxu0
      %v2305 = vadd.f32 %v2208, %v2304
      %v2306 = vpop.f32.mrb[0].mxu0
      %v2307 = vpop.f32.mrb[0].mxu0
      %v2308 = vadd.f32 %v2211, %v2307
      %v2309 = vpop.f32.mrb[0].mxu0
      %2310 = vdwg.mxu0
      %v2311 = vshrl.u32 %v1062, 16
      %v2314 = vshrl.u32 %v1074, 16
      %v2316 = vshll.u32 %v1074, 16
      %v2318 = vrot.slane %v2316, 1
      %v2319 = vor.u32 %v2314, %v2318
      %v2321 = vshll.u32 %v2311, 16
      %v2323 = vrot.slane %v2321, 1
      %v2324 = vsel %vm477, %v2319, %v2323
      %s2326 = scalar_lea.vmem %s2, 768
      %v2327 = vld [vmem:[%s2326] sm:$0xf]
      %v2328 = vld [vmem:[%s2326 + $0x4] sm:$0xf]
      %v2329 = vld [vmem:[%s2326 + $0x8] sm:$0xf]
      %v2330 = vld [vmem:[%s2326 + $0xc] sm:$0xf]
      %v2331 = vld [vmem:[%s2326 + $0x10] sm:$0xf]
      %v2332 = vld [vmem:[%s2326 + $0x14] sm:$0xf]
      %v2333 = vld [vmem:[%s2326 + $0x18] sm:$0xf]
      %v2334 = vld [vmem:[%s2326 + $0x1c] sm:$0xf]
      %v2335 = vld [vmem:[%s2326 + $0x20] sm:$0xf]
      %v2336 = vld [vmem:[%s2326 + $0x24] sm:$0xf]
      %v2337 = vld [vmem:[%s2326 + $0x28] sm:$0xf]
      %v2338 = vld [vmem:[%s2326 + $0x2c] sm:$0xf]
      %v2339 = vld [vmem:[%s2326 + $0x30] sm:$0xf]
      %v2340 = vld [vmem:[%s2326 + $0x34] sm:$0xf]
      %v2341 = vld [vmem:[%s2326 + $0x38] sm:$0xf]
      %v2342 = vld [vmem:[%s2326 + $0x3c] sm:$0xf]
      %v2343 = vld [vmem:[%s2326 + $0x40] sm:$0xf]
      %v2344 = vld [vmem:[%s2326 + $0x44] sm:$0xf]
      %v2345 = vld [vmem:[%s2326 + $0x48] sm:$0xf]
      %v2346 = vld [vmem:[%s2326 + $0x4c] sm:$0xf]
      %v2347 = vld [vmem:[%s2326 + $0x50] sm:$0xf]
      %v2348 = vld [vmem:[%s2326 + $0x54] sm:$0xf]
      %v2349 = vld [vmem:[%s2326 + $0x58] sm:$0xf]
      %v2350 = vld [vmem:[%s2326 + $0x5c] sm:$0xf]
      %v2351 = vld [vmem:[%s2326 + $0x60] sm:$0xf]
      %v2352 = vld [vmem:[%s2326 + $0x64] sm:$0xf]
      %v2353 = vld [vmem:[%s2326 + $0x68] sm:$0xf]
      %v2354 = vld [vmem:[%s2326 + $0x6c] sm:$0xf]
      %v2355 = vld [vmem:[%s2326 + $0x70] sm:$0xf]
      %v2356 = vld [vmem:[%s2326 + $0x74] sm:$0xf]
      %v2357 = vld [vmem:[%s2326 + $0x78] sm:$0xf]
      %v2358 = vld [vmem:[%s2326 + $0x7c] sm:$0xf]
      %v2359 = vld [vmem:[%s2326 + $0x80] sm:$0xf]
      %v2360 = vld [vmem:[%s2326 + $0x84] sm:$0xf]
      %v2361 = vld [vmem:[%s2326 + $0x88] sm:$0xf]
      %v2362 = vld [vmem:[%s2326 + $0x8c] sm:$0xf]
      %v2363 = vld [vmem:[%s2326 + $0x90] sm:$0xf]
      %v2364 = vld [vmem:[%s2326 + $0x94] sm:$0xf]
      %v2365 = vld [vmem:[%s2326 + $0x98] sm:$0xf]
      %v2366 = vld [vmem:[%s2326 + $0x9c] sm:$0xf]
      %v2367 = vld [vmem:[%s2326 + $0xa0] sm:$0xf]
      %v2368 = vld [vmem:[%s2326 + $0xa4] sm:$0xf]
      %v2369 = vld [vmem:[%s2326 + $0xa8] sm:$0xf]
      %v2370 = vld [vmem:[%s2326 + $0xac] sm:$0xf]
      %v2371 = vld [vmem:[%s2326 + $0xb0] sm:$0xf]
      %v2372 = vld [vmem:[%s2326 + $0xb4] sm:$0xf]
      %v2373 = vld [vmem:[%s2326 + $0xb8] sm:$0xf]
      %v2374 = vld [vmem:[%s2326 + $0xbc] sm:$0xf]
      %v2375 = vld [vmem:[%s2326 + $0xc0] sm:$0xf]
      %v2376 = vld [vmem:[%s2326 + $0xc4] sm:$0xf]
      %v2377 = vld [vmem:[%s2326 + $0xc8] sm:$0xf]
      %v2378 = vld [vmem:[%s2326 + $0xcc] sm:$0xf]
      %v2379 = vld [vmem:[%s2326 + $0xd0] sm:$0xf]
      %v2380 = vld [vmem:[%s2326 + $0xd4] sm:$0xf]
      %v2381 = vld [vmem:[%s2326 + $0xd8] sm:$0xf]
      %v2382 = vld [vmem:[%s2326 + $0xdc] sm:$0xf]
      %v2383 = vld [vmem:[%s2326 + $0xe0] sm:$0xf]
      %v2384 = vld [vmem:[%s2326 + $0xe4] sm:$0xf]
      %v2385 = vld [vmem:[%s2326 + $0xe8] sm:$0xf]
      %v2386 = vld [vmem:[%s2326 + $0xec] sm:$0xf]
      %v2387 = vld [vmem:[%s2326 + $0xf0] sm:$0xf]
      %v2388 = vld [vmem:[%s2326 + $0xf4] sm:$0xf]
      %v2389 = vld [vmem:[%s2326 + $0xf8] sm:$0xf]
      %v2390 = vld [vmem:[%s2326 + $0xfc] sm:$0xf]
      %v2455 = vunpack.c.l.b16 %v2327
      %v2456 = vunpack.c.l.b16 %v2328
      %v2457 = vunpack.c.l.b16 %v2329
      %v2458 = vunpack.c.l.b16 %v2330
      %v2459 = vunpack.c.l.b16 %v2331
      %v2460 = vunpack.c.l.b16 %v2332
      %v2461 = vunpack.c.l.b16 %v2333
      %v2462 = vunpack.c.l.b16 %v2334
      %v2463 = vunpack.c.l.b16 %v2335
      %v2464 = vunpack.c.l.b16 %v2336
      %v2465 = vunpack.c.l.b16 %v2337
      %v2466 = vunpack.c.l.b16 %v2338
      %v2467 = vunpack.c.l.b16 %v2339
      %v2468 = vunpack.c.l.b16 %v2340
      %v2469 = vunpack.c.l.b16 %v2341
      %v2470 = vunpack.c.l.b16 %v2342
      %v2471 = vunpack.c.l.b16 %v2343
      %v2472 = vunpack.c.l.b16 %v2344
      %v2473 = vunpack.c.l.b16 %v2345
      %v2474 = vunpack.c.l.b16 %v2346
      %v2475 = vunpack.c.l.b16 %v2347
      %v2476 = vunpack.c.l.b16 %v2348
      %v2477 = vunpack.c.l.b16 %v2349
      %v2478 = vunpack.c.l.b16 %v2350
      %v2479 = vunpack.c.l.b16 %v2351
      %v2480 = vunpack.c.l.b16 %v2352
      %v2481 = vunpack.c.l.b16 %v2353
      %v2482 = vunpack.c.l.b16 %v2354
      %v2483 = vunpack.c.l.b16 %v2355
      %v2484 = vunpack.c.l.b16 %v2356
      %v2485 = vunpack.c.l.b16 %v2357
      %v2486 = vunpack.c.l.b16 %v2358
      %v2487 = vunpack.c.l.b16 %v2359
      %v2488 = vunpack.c.l.b16 %v2360
      %v2489 = vunpack.c.l.b16 %v2361
      %v2490 = vunpack.c.l.b16 %v2362
      %v2491 = vunpack.c.l.b16 %v2363
      %v2492 = vunpack.c.l.b16 %v2364
      %v2493 = vunpack.c.l.b16 %v2365
      %v2494 = vunpack.c.l.b16 %v2366
      %v2495 = vunpack.c.l.b16 %v2367
      %v2496 = vunpack.c.l.b16 %v2368
      %v2497 = vunpack.c.l.b16 %v2369
      %v2498 = vunpack.c.l.b16 %v2370
      %v2499 = vunpack.c.l.b16 %v2371
      %v2500 = vunpack.c.l.b16 %v2372
      %v2501 = vunpack.c.l.b16 %v2373
      %v2502 = vunpack.c.l.b16 %v2374
      %v2503 = vunpack.c.l.b16 %v2375
      %v2504 = vunpack.c.l.b16 %v2376
      %v2505 = vunpack.c.l.b16 %v2377
      %v2506 = vunpack.c.l.b16 %v2378
      %v2507 = vunpack.c.l.b16 %v2379
      %v2508 = vunpack.c.l.b16 %v2380
      %v2509 = vunpack.c.l.b16 %v2381
      %v2510 = vunpack.c.l.b16 %v2382
      %v2511 = vunpack.c.l.b16 %v2383
      %v2512 = vunpack.c.l.b16 %v2384
      %v2513 = vunpack.c.l.b16 %v2385
      %v2514 = vunpack.c.l.b16 %v2386
      %v2515 = vunpack.c.l.b16 %v2387
      %v2516 = vunpack.c.l.b16 %v2388
      %v2517 = vunpack.c.l.b16 %v2389
      %v2518 = vunpack.c.l.b16 %v2390
      %v2519 = vpack.c.b16 %v2456, %v2455
      %v2520 = vpack.c.b16 %v2458, %v2457
      %v2521 = vpack.c.b16 %v2460, %v2459
      %v2522 = vpack.c.b16 %v2462, %v2461
      %v2523 = vpack.c.b16 %v2464, %v2463
      %v2524 = vpack.c.b16 %v2466, %v2465
      %v2525 = vpack.c.b16 %v2468, %v2467
      %v2526 = vpack.c.b16 %v2470, %v2469
      %v2527 = vpack.c.b16 %v2472, %v2471
      %v2528 = vpack.c.b16 %v2474, %v2473
      %v2529 = vpack.c.b16 %v2476, %v2475
      %v2530 = vpack.c.b16 %v2478, %v2477
      %v2531 = vpack.c.b16 %v2480, %v2479
      %v2532 = vpack.c.b16 %v2482, %v2481
      %v2533 = vpack.c.b16 %v2484, %v2483
      %v2534 = vpack.c.b16 %v2486, %v2485
      %v2535 = vpack.c.b16 %v2488, %v2487
      %v2536 = vpack.c.b16 %v2490, %v2489
      %v2537 = vpack.c.b16 %v2492, %v2491
      %v2538 = vpack.c.b16 %v2494, %v2493
      %v2539 = vpack.c.b16 %v2496, %v2495
      %v2540 = vpack.c.b16 %v2498, %v2497
      %v2541 = vpack.c.b16 %v2500, %v2499
      %v2542 = vpack.c.b16 %v2502, %v2501
      %v2543 = vpack.c.b16 %v2504, %v2503
      %v2544 = vpack.c.b16 %v2506, %v2505
      %v2545 = vpack.c.b16 %v2508, %v2507
      %v2546 = vpack.c.b16 %v2510, %v2509
      %v2547 = vpack.c.b16 %v2512, %v2511
      %v2548 = vpack.c.b16 %v2514, %v2513
      %v2549 = vpack.c.b16 %v2516, %v2515
      %v2550 = vpack.c.b16 %v2518, %v2517
      %2583 = vmatprep.subr.bf16.mxu0 0
      %2584 = vmatpush1.bf16.msra.mxu0 %v2519
      %2585 = vmatprep.subr.bf16.mxu0 0
      %2586 = vmatpush1.bf16.msra.mxu0 %v2520
      %2587 = vmatprep.subr.bf16.mxu0 0
      %2588 = vmatpush1.bf16.msra.mxu0 %v2521
      %2589 = vmatprep.subr.bf16.mxu0 0
      %2590 = vmatpush1.bf16.msra.mxu0 %v2522
      %2591 = vmatprep.subr.bf16.mxu0 0
      %2592 = vmatpush1.bf16.msra.mxu0 %v2523
      %2593 = vmatprep.subr.bf16.mxu0 0
      %2594 = vmatpush1.bf16.msra.mxu0 %v2524
      %2595 = vmatprep.subr.bf16.mxu0 0
      %2596 = vmatpush1.bf16.msra.mxu0 %v2525
      %2597 = vmatprep.subr.bf16.mxu0 0
      %2598 = vmatpush1.bf16.msra.mxu0 %v2526
      %2599 = vmatprep.subr.bf16.mxu0 0
      %2600 = vmatpush1.bf16.msra.mxu0 %v2527
      %2601 = vmatprep.subr.bf16.mxu0 0
      %2602 = vmatpush1.bf16.msra.mxu0 %v2528
      %2603 = vmatprep.subr.bf16.mxu0 0
      %2604 = vmatpush1.bf16.msra.mxu0 %v2529
      %2605 = vmatprep.subr.bf16.mxu0 0
      %2606 = vmatpush1.bf16.msra.mxu0 %v2530
      %2607 = vmatprep.subr.bf16.mxu0 0
      %2608 = vmatpush1.bf16.msra.mxu0 %v2531
      %2609 = vmatprep.subr.bf16.mxu0 0
      %2610 = vmatpush1.bf16.msra.mxu0 %v2532
      %2611 = vmatprep.subr.bf16.mxu0 0
      %2612 = vmatpush1.bf16.msra.mxu0 %v2533
      %2613 = vmatprep.subr.bf16.mxu0 0
      %2614 = vmatpush1.bf16.msra.mxu0 %v2534
      %2615 = vmatprep.mubr.bf16.mxu0 %v1766
      %2616 = vmatmul.mubr.bf16.gmra.mrb[0].mxu0 %v501
      %v2617 = vpop.f32.mrb[0].mxu0
      %v2618 = vadd.f32 0.0, %v2617
      %v2619 = vpop.f32.mrb[0].mxu0
      %v2620 = vpop.f32.mrb[0].mxu0
      %v2621 = vadd.f32 0.0, %v2620
      %v2622 = vpop.f32.mrb[0].mxu0
      %2623 = vmatprep.mubr.bf16.mxu0 %v1778
      %2624 = vmatmul.mubr.bf16.gmra.mrb[0].mxu0 %v513
      %v2625 = vpop.f32.mrb[0].mxu0
      %v2626 = vadd.f32 0.0, %v2625
      %v2627 = vpop.f32.mrb[0].mxu0
      %v2628 = vpop.f32.mrb[0].mxu0
      %v2629 = vadd.f32 0.0, %v2628
      %v2630 = vpop.f32.mrb[0].mxu0
      %2631 = vmatprep.mubr.bf16.mxu0 %v1790
      %2632 = vmatmul.mubr.bf16.gmra.mrb[0].mxu0 %v525
      %v2633 = vpop.f32.mrb[0].mxu0
      %v2634 = vadd.f32 0.0, %v2633
      %v2635 = vpop.f32.mrb[0].mxu0
      %v2636 = vpop.f32.mrb[0].mxu0
      %v2637 = vadd.f32 0.0, %v2636
      %v2638 = vpop.f32.mrb[0].mxu0
      %2639 = vmatprep.mubr.bf16.mxu0 %v1802
      %2640 = vmatmul.mubr.bf16.gmra.mrb[0].mxu0 %v537
      %v2641 = vpop.f32.mrb[0].mxu0
      %v2642 = vadd.f32 0.0, %v2641
      %v2643 = vpop.f32.mrb[0].mxu0
      %v2644 = vpop.f32.mrb[0].mxu0
      %v2645 = vadd.f32 0.0, %v2644
      %v2646 = vpop.f32.mrb[0].mxu0
      %2647 = vmatprep.mubr.bf16.mxu0 %v1814
      %2648 = vmatmul.mubr.bf16.gmra.mrb[0].mxu0 %v549
      %v2649 = vpop.f32.mrb[0].mxu0
      %v2650 = vadd.f32 0.0, %v2649
      %v2651 = vpop.f32.mrb[0].mxu0
      %v2652 = vpop.f32.mrb[0].mxu0
      %v2653 = vadd.f32 0.0, %v2652
      %v2654 = vpop.f32.mrb[0].mxu0
      %2655 = vmatprep.mubr.bf16.mxu0 %v1826
      %2656 = vmatmul.mubr.bf16.gmra.mrb[0].mxu0 %v561
      %v2657 = vpop.f32.mrb[0].mxu0
      %v2658 = vadd.f32 0.0, %v2657
      %v2659 = vpop.f32.mrb[0].mxu0
      %v2660 = vpop.f32.mrb[0].mxu0
      %v2661 = vadd.f32 0.0, %v2660
      %v2662 = vpop.f32.mrb[0].mxu0
      %2663 = vmatprep.mubr.bf16.mxu0 %v1838
      %2664 = vmatmul.mubr.bf16.gmra.mrb[0].mxu0 %v573
      %v2665 = vpop.f32.mrb[0].mxu0
      %v2666 = vadd.f32 0.0, %v2665
      %v2667 = vpop.f32.mrb[0].mxu0
      %v2668 = vpop.f32.mrb[0].mxu0
      %v2669 = vadd.f32 0.0, %v2668
      %v2670 = vpop.f32.mrb[0].mxu0
      %2671 = vmatprep.mubr.bf16.mxu0 %v1850
      %2672 = vmatmul.mubr.bf16.gmra.mrb[0].mxu0 %v602
      %v2673 = vpop.f32.mrb[0].mxu0
      %v2674 = vadd.f32 0.0, %v2673
      %v2675 = vpop.f32.mrb[0].mxu0
      %v2676 = vpop.f32.mrb[0].mxu0
      %v2677 = vadd.f32 0.0, %v2676
      %v2678 = vpop.f32.mrb[0].mxu0
      %2679 = vdwg.mxu0
      %2680 = vmatprep.subr.bf16.mxu0 0
      %2681 = vmatpush1.bf16.msra.mxu0 %v2535
      %2682 = vmatprep.subr.bf16.mxu0 0
      %2683 = vmatpush1.bf16.msra.mxu0 %v2536
      %2684 = vmatprep.subr.bf16.mxu0 0
      %2685 = vmatpush1.bf16.msra.mxu0 %v2537
      %2686 = vmatprep.subr.bf16.mxu0 0
      %2687 = vmatpush1.bf16.msra.mxu0 %v2538
      %2688 = vmatprep.subr.bf16.mxu0 0
      %2689 = vmatpush1.bf16.msra.mxu0 %v2539
      %2690 = vmatprep.subr.bf16.mxu0 0
      %2691 = vmatpush1.bf16.msra.mxu0 %v2540
      %2692 = vmatprep.subr.bf16.mxu0 0
      %2693 = vmatpush1.bf16.msra.mxu0 %v2541
      %2694 = vmatprep.subr.bf16.mxu0 0
      %2695 = vmatpush1.bf16.msra.mxu0 %v2542
      %2696 = vmatprep.subr.bf16.mxu0 0
      %2697 = vmatpush1.bf16.msra.mxu0 %v2543
      %2698 = vmatprep.subr.bf16.mxu0 0
      %2699 = vmatpush1.bf16.msra.mxu0 %v2544
      %2700 = vmatprep.subr.bf16.mxu0 0
      %2701 = vmatpush1.bf16.msra.mxu0 %v2545
      %2702 = vmatprep.subr.bf16.mxu0 0
      %2703 = vmatpush1.bf16.msra.mxu0 %v2546
      %2704 = vmatprep.subr.bf16.mxu0 0
      %2705 = vmatpush1.bf16.msra.mxu0 %v2547
      %2706 = vmatprep.subr.bf16.mxu0 0
      %2707 = vmatpush1.bf16.msra.mxu0 %v2548
      %2708 = vmatprep.subr.bf16.mxu0 0
      %2709 = vmatpush1.bf16.msra.mxu0 %v2549
      %2710 = vmatprep.subr.bf16.mxu0 0
      %2711 = vmatpush1.bf16.msra.mxu0 %v2550
      %2712 = vmatprep.mubr.bf16.mxu0 %v1778
      %2713 = vmatmul.mubr.bf16.gmra.mrb[0].mxu0 %v513
      %v2714 = vpop.f32.mrb[0].mxu0
      %v2715 = vadd.f32 %v2618, %v2714
      %v2716 = vpop.f32.mrb[0].mxu0
      %v2717 = vpop.f32.mrb[0].mxu0
      %v2718 = vadd.f32 %v2621, %v2717
      %v2719 = vpop.f32.mrb[0].mxu0
      %2720 = vmatprep.mubr.bf16.mxu0 %v1790
      %2721 = vmatmul.mubr.bf16.gmra.mrb[0].mxu0 %v525
      %v2722 = vpop.f32.mrb[0].mxu0
      %v2723 = vadd.f32 %v2626, %v2722
      %v2724 = vpop.f32.mrb[0].mxu0
      %v2725 = vpop.f32.mrb[0].mxu0
      %v2726 = vadd.f32 %v2629, %v2725
      %v2727 = vpop.f32.mrb[0].mxu0
      %2728 = vmatprep.mubr.bf16.mxu0 %v1802
      %2729 = vmatmul.mubr.bf16.gmra.mrb[0].mxu0 %v537
      %v2730 = vpop.f32.mrb[0].mxu0
      %v2731 = vadd.f32 %v2634, %v2730
      %v2732 = vpop.f32.mrb[0].mxu0
      %v2733 = vpop.f32.mrb[0].mxu0
      %v2734 = vadd.f32 %v2637, %v2733
      %v2735 = vpop.f32.mrb[0].mxu0
      %2736 = vmatprep.mubr.bf16.mxu0 %v1814
      %2737 = vmatmul.mubr.bf16.gmra.mrb[0].mxu0 %v549
      %v2738 = vpop.f32.mrb[0].mxu0
      %v2739 = vadd.f32 %v2642, %v2738
      %v2740 = vpop.f32.mrb[0].mxu0
      %v2741 = vpop.f32.mrb[0].mxu0
      %v2742 = vadd.f32 %v2645, %v2741
      %v2743 = vpop.f32.mrb[0].mxu0
      %2744 = vmatprep.mubr.bf16.mxu0 %v1826
      %2745 = vmatmul.mubr.bf16.gmra.mrb[0].mxu0 %v561
      %v2746 = vpop.f32.mrb[0].mxu0
      %v2747 = vadd.f32 %v2650, %v2746
      %v2748 = vpop.f32.mrb[0].mxu0
      %v2749 = vpop.f32.mrb[0].mxu0
      %v2750 = vadd.f32 %v2653, %v2749
      %v2751 = vpop.f32.mrb[0].mxu0
      %2752 = vmatprep.mubr.bf16.mxu0 %v1838
      %2753 = vmatmul.mubr.bf16.gmra.mrb[0].mxu0 %v573
      %v2754 = vpop.f32.mrb[0].mxu0
      %v2755 = vadd.f32 %v2658, %v2754
      %v2756 = vpop.f32.mrb[0].mxu0
      %v2757 = vpop.f32.mrb[0].mxu0
      %v2758 = vadd.f32 %v2661, %v2757
      %v2759 = vpop.f32.mrb[0].mxu0
      %2760 = vmatprep.mubr.bf16.mxu0 %v1850
      %2761 = vmatmul.mubr.bf16.gmra.mrb[0].mxu0 %v602
      %v2762 = vpop.f32.mrb[0].mxu0
      %v2763 = vadd.f32 %v2666, %v2762
      %v2764 = vpop.f32.mrb[0].mxu0
      %v2765 = vpop.f32.mrb[0].mxu0
      %v2766 = vadd.f32 %v2669, %v2765
      %v2767 = vpop.f32.mrb[0].mxu0
      %2768 = vmatprep.mubr.bf16.mxu0 %v2324
      %2769 = vmatmul.mubr.bf16.gmra.mrb[0].mxu0 %v1074
      %v2770 = vpop.f32.mrb[0].mxu0
      %v2771 = vadd.f32 %v2674, %v2770
      %v2772 = vpop.f32.mrb[0].mxu0
      %v2773 = vpop.f32.mrb[0].mxu0
      %v2774 = vadd.f32 %v2677, %v2773
      %v2775 = vpop.f32.mrb[0].mxu0
      %2776 = vdwg.mxu0
      %v2777 = vadd.f32 %v2249, %v1531
      %v2778 = vadd.f32 %v2252, %v1531
      %v2779 = vadd.f32 %v2715, %v1531
      %v2780 = vadd.f32 %v2718, %v1531
      %v2781 = vadd.f32 %v2257, %v1531
      %v2782 = vadd.f32 %v2260, %v1531
      %v2783 = vadd.f32 %v2723, %v1531
      %v2784 = vadd.f32 %v2726, %v1531
      %v2785 = vadd.f32 %v2265, %v1531
      %v2786 = vadd.f32 %v2268, %v1531
      %v2787 = vadd.f32 %v2731, %v1531
      %v2788 = vadd.f32 %v2734, %v1531
      %v2789 = vadd.f32 %v2273, %v1531
      %v2790 = vadd.f32 %v2276, %v1531
      %v2791 = vadd.f32 %v2739, %v1531
      %v2792 = vadd.f32 %v2742, %v1531
      %v2793 = vadd.f32 %v2281, %v1531
      %v2794 = vadd.f32 %v2284, %v1531
      %v2795 = vadd.f32 %v2747, %v1531
      %v2796 = vadd.f32 %v2750, %v1531
      %v2797 = vadd.f32 %v2289, %v1531
      %v2798 = vadd.f32 %v2292, %v1531
      %v2799 = vadd.f32 %v2755, %v1531
      %v2800 = vadd.f32 %v2758, %v1531
      %v2801 = vadd.f32 %v2297, %v1531
      %v2802 = vadd.f32 %v2300, %v1531
      %v2803 = vadd.f32 %v2763, %v1531
      %v2804 = vadd.f32 %v2766, %v1531
      %v2805 = vadd.f32 %v2305, %v1531
      %v2806 = vadd.f32 %v2308, %v1531
      %v2807 = vadd.f32 %v2771, %v1531
      %v2808 = vadd.f32 %v2774, %v1531
      %v2809 = vpack.c.bf16 %v2778, %v2777
      %v2810 = vpack.c.bf16 %v2780, %v2779
      %v2811 = vpack.c.bf16 %v2782, %v2781
      %v2812 = vpack.c.bf16 %v2784, %v2783
      %v2813 = vpack.c.bf16 %v2786, %v2785
      %v2814 = vpack.c.bf16 %v2788, %v2787
      %v2815 = vpack.c.bf16 %v2790, %v2789
      %v2816 = vpack.c.bf16 %v2792, %v2791
      %v2817 = vpack.c.bf16 %v2794, %v2793
      %v2818 = vpack.c.bf16 %v2796, %v2795
      %v2819 = vpack.c.bf16 %v2798, %v2797
      %v2820 = vpack.c.bf16 %v2800, %v2799
      %v2821 = vpack.c.bf16 %v2802, %v2801
      %v2822 = vpack.c.bf16 %v2804, %v2803
      %v2823 = vpack.c.bf16 %v2806, %v2805
      %v2824 = vpack.c.bf16 %v2808, %v2807
      %v2841 = vunpack.c.l.b16 %v2809
      %v2842 = vunpack.c.h.b16 %v2809
      %v2843 = vunpack.c.l.b16 %v2810
      %v2844 = vunpack.c.h.b16 %v2810
      %v2845 = vunpack.c.l.b16 %v2811
      %v2846 = vunpack.c.h.b16 %v2811
      %v2847 = vunpack.c.l.b16 %v2812
      %v2848 = vunpack.c.h.b16 %v2812
      %v2849 = vunpack.c.l.b16 %v2813
      %v2850 = vunpack.c.h.b16 %v2813
      %v2851 = vunpack.c.l.b16 %v2814
      %v2852 = vunpack.c.h.b16 %v2814
      %v2853 = vunpack.c.l.b16 %v2815
      %v2854 = vunpack.c.h.b16 %v2815
      %v2855 = vunpack.c.l.b16 %v2816
      %v2856 = vunpack.c.h.b16 %v2816
      %v2857 = vunpack.c.l.b16 %v2817
      %v2858 = vunpack.c.h.b16 %v2817
      %v2859 = vunpack.c.l.b16 %v2818
      %v2860 = vunpack.c.h.b16 %v2818
      %v2861 = vunpack.c.l.b16 %v2819
      %v2862 = vunpack.c.h.b16 %v2819
      %v2863 = vunpack.c.l.b16 %v2820
      %v2864 = vunpack.c.h.b16 %v2820
      %v2865 = vunpack.c.l.b16 %v2821
      %v2866 = vunpack.c.h.b16 %v2821
      %v2867 = vunpack.c.l.b16 %v2822
      %v2868 = vunpack.c.h.b16 %v2822
      %v2869 = vunpack.c.l.b16 %v2823
      %v2870 = vunpack.c.h.b16 %v2823
      %v2871 = vunpack.c.l.b16 %v2824
      %v2872 = vunpack.c.h.b16 %v2824
      %v2873 = vpack.c.b16 %v2841, %v2841
      %v2874 = vpack.c.b16 %v2842, %v2842
      %v2875 = vpack.c.b16 %v2843, %v2843
      %v2876 = vpack.c.b16 %v2844, %v2844
      %v2877 = vpack.c.b16 %v2845, %v2845
      %v2878 = vpack.c.b16 %v2846, %v2846
      %v2879 = vpack.c.b16 %v2847, %v2847
      %v2880 = vpack.c.b16 %v2848, %v2848
      %v2881 = vpack.c.b16 %v2849, %v2849
      %v2882 = vpack.c.b16 %v2850, %v2850
      %v2883 = vpack.c.b16 %v2851, %v2851
      %v2884 = vpack.c.b16 %v2852, %v2852
      %v2885 = vpack.c.b16 %v2853, %v2853
      %v2886 = vpack.c.b16 %v2854, %v2854
      %v2887 = vpack.c.b16 %v2855, %v2855
      %v2888 = vpack.c.b16 %v2856, %v2856
      %v2889 = vpack.c.b16 %v2857, %v2857
      %v2890 = vpack.c.b16 %v2858, %v2858
      %v2891 = vpack.c.b16 %v2859, %v2859
      %v2892 = vpack.c.b16 %v2860, %v2860
      %v2893 = vpack.c.b16 %v2861, %v2861
      %v2894 = vpack.c.b16 %v2862, %v2862
      %v2895 = vpack.c.b16 %v2863, %v2863
      %v2896 = vpack.c.b16 %v2864, %v2864
      %v2897 = vpack.c.b16 %v2865, %v2865
      %v2898 = vpack.c.b16 %v2866, %v2866
      %v2899 = vpack.c.b16 %v2867, %v2867
      %v2900 = vpack.c.b16 %v2868, %v2868
      %v2901 = vpack.c.b16 %v2869, %v2869
      %v2902 = vpack.c.b16 %v2870, %v2870
      %v2903 = vpack.c.b16 %v2871, %v2871
      %v2904 = vpack.c.b16 %v2872, %v2872
      %2937 = vst [vmem:[%s371] sm:$0xf] %v2873
      %2938 = vst [vmem:[%s371 + $0x4] sm:$0xf] %v2874
      %2939 = vst [vmem:[%s371 + $0x8] sm:$0xf] %v2875
      %2940 = vst [vmem:[%s371 + $0xc] sm:$0xf] %v2876
      %2941 = vst [vmem:[%s371 + $0x10] sm:$0xf] %v2877
      %2942 = vst [vmem:[%s371 + $0x14] sm:$0xf] %v2878
      %2943 = vst [vmem:[%s371 + $0x18] sm:$0xf] %v2879
      %2944 = vst [vmem:[%s371 + $0x1c] sm:$0xf] %v2880
      %2945 = vst [vmem:[%s371 + $0x20] sm:$0xf] %v2881
      %2946 = vst [vmem:[%s371 + $0x24] sm:$0xf] %v2882
      %2947 = vst [vmem:[%s371 + $0x28] sm:$0xf] %v2883
      %2948 = vst [vmem:[%s371 + $0x2c] sm:$0xf] %v2884
      %2949 = vst [vmem:[%s371 + $0x30] sm:$0xf] %v2885
      %2950 = vst [vmem:[%s371 + $0x34] sm:$0xf] %v2886
      %2951 = vst [vmem:[%s371 + $0x38] sm:$0xf] %v2887
      %2952 = vst [vmem:[%s371 + $0x3c] sm:$0xf] %v2888
      %2953 = vst [vmem:[%s371 + $0x40] sm:$0xf] %v2889
      %2954 = vst [vmem:[%s371 + $0x44] sm:$0xf] %v2890
      %2955 = vst [vmem:[%s371 + $0x48] sm:$0xf] %v2891
      %2956 = vst [vmem:[%s371 + $0x4c] sm:$0xf] %v2892
      %2957 = vst [vmem:[%s371 + $0x50] sm:$0xf] %v2893
      %2958 = vst [vmem:[%s371 + $0x54] sm:$0xf] %v2894
      %2959 = vst [vmem:[%s371 + $0x58] sm:$0xf] %v2895
      %2960 = vst [vmem:[%s371 + $0x5c] sm:$0xf] %v2896
      %2961 = vst [vmem:[%s371 + $0x60] sm:$0xf] %v2897
      %2962 = vst [vmem:[%s371 + $0x64] sm:$0xf] %v2898
      %2963 = vst [vmem:[%s371 + $0x68] sm:$0xf] %v2899
      %2964 = vst [vmem:[%s371 + $0x6c] sm:$0xf] %v2900
      %2965 = vst [vmem:[%s371 + $0x70] sm:$0xf] %v2901
      %2966 = vst [vmem:[%s371 + $0x74] sm:$0xf] %v2902
      %2967 = vst [vmem:[%s371 + $0x78] sm:$0xf] %v2903
      %2968 = vst [vmem:[%s371 + $0x7c] sm:$0xf] %v2904
      %s2969 = smul.u32 16, %s22
      %p2970 = scmp.lt.s32.totalorder %s21, 1
      %s2971 = scalar_select %p2970, %s21, 1
      %p2972 = scmp.lt.s32.totalorder %s2969, 31
      %s2973 = scalar_select %p2972, %s2969, 31
      %s2974 = smul.addr %s2973, 2
      %s2975 = smul.addr %s2971, 64
      %s2976 = sadd.s32 %s2974, %s2975
      %s2977 = smul.addr %s2976, 4
      %s2978 = scalar_lea.vmem %s4, %s2977
      %s2979 = smul.u32 16, %s22
      %p2980 = scmp.lt.s32.totalorder %s21, 1
      %s2981 = scalar_select %p2980, %s21, 1
      %p2982 = scmp.lt.s32.totalorder %s2979, 31
      %s2983 = scalar_select %p2982, %s2979, 31
      %s2984 = smul.addr %s2983, 2
      %s2985 = smul.addr %s2981, 64
      %s2986 = sadd.s32 %s2984, %s2985
      %s2987 = smul.addr %s2986, 4
      %s2988 = scalar_lea.vmem %s5, %s2987
      // Predicated region
      $region37: #{_lambda_.1} parent=35 // pred_check
        %p2989 = pneg %p151
      $region38: #{_lambda_.1} parent=35 // pred_check_branch
        %2991 = sbr.rel (%p2989) target = $region40
      $region39: #{_lambda_.1} parent=35 // pred_region
        %s2992 = smul.u32 16, %s22
      $region40: #{_lambda_.1} parent=35 // pred_fallthru
        _
      // Predicated region
      $region41: #{_lambda_.1} parent=35 // pred_check
        %p2993 = pneg %p179
      $region42: #{_lambda_.1} parent=35 // pred_check_branch
        %2995 = sbr.rel (%p2993) target = $region44
      $region43: #{_lambda_.1} parent=35 // pred_region
        %s2996 = smul.u32 16, %s22
      $region44: #{_lambda_.1} parent=35 // pred_fallthru
        _
    $region36: #{_lambda_.1} parent=5 // pred_fallthru
      _
    %p2997 = scmp.le.s32.totalorder 2, %s12
    // Predicated region
    $region45: #{_lambda_.1} parent=5 // pred_check
      %p2998 = pneg %p2997
    $region46: #{_lambda_.1} parent=5 // pred_check_branch
      %3000 = sbr.rel (%p2998) target = $region48
    $region47: #{_lambda_.1} parent=5 // pred_region
      %s3001 = ssub.s32 %s12, 2
      // Predicated region
      $region49: #{_lambda_.1} parent=47 // pred_check
        %p3002 = pneg %p157
      $region50: #{_lambda_.1} parent=47 // pred_check_branch
        %3004 = sbr.rel (%p3002) target = $region52
      $region51: #{_lambda_.1} parent=47 // pred_region
        %s3005 = smul.u32 16, %s24
        %p3006 = scmp.lt.s32.totalorder %s23, 1
        %s3007 = scalar_select %p3006, %s23, 1
        %p3008 = scmp.lt.s32.totalorder %s3005, 31
        %s3009 = scalar_select %p3008, %s3005, 31
        %s3010 = smul.addr %s3009, 2
        %s3011 = smul.addr %s3007, 64
        %s3012 = sadd.s32 %s3010, %s3011
        %s3013 = smul.addr %s3012, 4
        %s3014 = scalar_lea.vmem %s4, %s3013
      $region52: #{_lambda_.1} parent=47 // pred_fallthru
        _
      // Predicated region
      $region53: #{_lambda_.1} parent=47 // pred_check
        %p3015 = pneg %p185
      $region54: #{_lambda_.1} parent=47 // pred_check_branch
        %3017 = sbr.rel (%p3015) target = $region56
      $region55: #{_lambda_.1} parent=47 // pred_region
        %s3018 = smul.u32 16, %s24
        %p3019 = scmp.lt.s32.totalorder %s23, 1
        %s3020 = scalar_select %p3019, %s23, 1
        %p3021 = scmp.lt.s32.totalorder %s3018, 31
        %s3022 = scalar_select %p3021, %s3018, 31
        %s3023 = smul.addr %s3022, 2
        %s3024 = smul.addr %s3020, 64
        %s3025 = sadd.s32 %s3023, %s3024
        %s3026 = smul.addr %s3025, 4
        %s3027 = scalar_lea.vmem %s5, %s3026
      $region56: #{_lambda_.1} parent=47 // pred_fallthru
        _
    $region48: #{_lambda_.1} parent=5 // pred_fallthru
      _
  $region6: #{_lambda_.1} parent=0 // loop_footer
    %s16 = sadd.s32 1, %s12
  $region7: #{_lambda_.1} parent=0 // loop_footer_branch
    %11 = sbr.rel target = $region3
  $region8: #{_lambda_.1} parent=0 // loop_exit
    _

</llo_original>
